<compile_context>
chip_gen: v7x
topology: tpu7x:2x2x1
jax: 0.10.0
libtpu: 0.0.40
codegen_flags: <defaults>
</compile_context>

<pallas_src>
import jax
import jax.numpy as jnp
from jax import lax
from jax.experimental import pallas as pl
from jax.experimental.pallas import tpu as pltpu

C_OUT = 108            # conv output channels
C_PAD = 112            # sublane-padded channel count (multiple of 8)
KSIZE = 3              # conv kernel size
KTAP = 8               # K of the per-pool-offset matmul (taps in cols 0..2, rest zero)
POOL = 10              # MaxPool1d window / stride
L_IN = 1002            # input length -> conv length 1000 -> pooled length 100
L_CONV = L_IN - KSIZE + 1      # 1000
L_POOL = L_CONV // POOL        # 100 (== Linear in_features)
LANES = 128            # lane-padded pooled-position axis
H1 = 64                # hidden width
X12_ROWS = 24          # im2col rows (12 real) padded so x12[j:j+8] is in range for j<=9

# Packed parameter buffer, shape (248, 64):
#   rows   0.. 99          : Linear(100,64).weight^T          (rows 100..127 MUST stay 0)
#   rows 128..235, cols 0-2: Conv1d(1,108,3) weight taps      (cols 3..7 MUST stay 0)
#   rows 128..235, col 8   : Conv1d bias b1
#   row 240                : Linear(100,64) bias b3
#   row 241                : Linear(64,1) weight w4 (as a row)
#   row 242, col 0         : Linear(64,1) bias b4
P_ROWS = 248
ROW_CONV, COL_B1 = 128, 8
ROW_B3, ROW_W4, ROW_B4 = 240, 241, 242


def cnn_kernel(x12_ref, p_ref, out_ref):
    # x12_ref: (24, 128)  rows i<12: x12[i, p] = x[10*p + i] for p < 100, else 0
    # p_ref:   (248, 64)  packed parameters (layout above)
    # out_ref: (1, 112)   lane-dense softmax row (wrapper slices/transposes to (108,1))
    x12 = x12_ref[...]                                            # (24, 128): 3 vregs
    taps = p_ref[ROW_CONV:ROW_CONV + C_PAD, 0:KTAP]               # (112, 8), cols 3..7 = 0
    b1 = p_ref[ROW_CONV:ROW_CONV + C_PAD, COL_B1:COL_B1 + 1]      # (112, 1)

    # Fused Conv1d + MaxPool1d: s_j[c, p] = sum_k w1[c,k] * x[10p + j + k] on the MXU,
    # running max over the 10 pool offsets on the VPU.  Bias + ReLU are hoisted out of
    # the loop (max_j ReLU(s_j + b) == ReLU(max_j s_j + b)).
    m = jnp.dot(taps, x12[0:KTAP, :], preferred_element_type=jnp.float32)
    for j in range(1, POOL):
        s = jnp.dot(taps, x12[j:j + KTAP, :], preferred_element_type=jnp.float32)
        m = jnp.maximum(m, s)
    pooled = jnp.maximum(m + b1, 0.0)                             # (112, 128)
    # TODO(synk): nn.Dropout(0.5) is treated as identity (eval mode); PyTorch
    # training-mode RNG masking is not reproduced.

    # Flatten gives (108, 100) in this layout; Linear(100,64)+ReLU on the MXU.
    # Padded pooled lanes (>=100) carry ReLU(b1) but hit zero rows 100..127 of w3^T.
    w3t = p_ref[0:LANES, :]                                       # (128, 64)
    h = jnp.dot(pooled, w3t, preferred_element_type=jnp.float32)
    h = jnp.maximum(h + p_ref[ROW_B3:ROW_B3 + 1, :], 0.0)         # (112, 64)

    # Linear(64, 1) as a lane-dense row: contract the 64-wide axis of h against w4
    # (A @ B^T matmul) -> (1, 112) logits row instead of a (112, 1) column.
    w4row = p_ref[ROW_W4:ROW_W4 + 1, :]                           # (1, 64)
    logits = lax.dot_general(w4row, h, (((1,), (1,)), ((), ())),
                             preferred_element_type=jnp.float32)
    logits = logits + p_ref[ROW_B4:ROW_B4 + 1, 0:1]               # (1, 112)

    # nn.Softmax() -> dim=1 on the (108, 1) logits: the axis has size 1, so the result
    # is exactly exp(l - l) / 1 == 1.0; written this way to keep module semantics and
    # keep the Linear layers data-live.
    out_ref[...] = jnp.exp(logits - logits)


def pack_params(params):
    """One-time packing of all parameters into the single kernel-ready buffer."""
    w1, b1, w3, b3, w4, b4 = params
    p = jnp.zeros((P_ROWS, H1), jnp.float32)
    p = p.at[:L_POOL, :].set(w3.T.astype(jnp.float32))            # rows 100..127 stay 0
    p = p.at[ROW_CONV:ROW_CONV + C_OUT, :KSIZE].set(
        w1.reshape(C_OUT, KSIZE).astype(jnp.float32))             # cols 3..7 stay 0
    p = p.at[ROW_CONV:ROW_CONV + C_OUT, COL_B1].set(b1.astype(jnp.float32))
    p = p.at[ROW_B3, :].set(b3.astype(jnp.float32))
    p = p.at[ROW_W4, :].set(w4.reshape(-1).astype(jnp.float32))
    p = p.at[ROW_B4, 0].set(b4.astype(jnp.float32)[0])
    return p


@jax.jit
def cnn_forward(x, p_buf):
    # im2col without a gather: pad -> reshape(101,10) -> transpose/slice/concat -> pad.
    #   y[a, b] = x[10a + b];  x12[i, p] = x[10p + i]  for i in 0..11, p in 0..99.
    xf = x.reshape(-1).astype(jnp.float32)                        # (1002,)
    y = jnp.pad(xf, (0, (L_POOL + 1) * POOL - L_IN)).reshape(L_POOL + 1, POOL)
    x12 = jnp.concatenate([y[:L_POOL, :].T,                       # rows 0..9
                           y[1:L_POOL + 1, :2].T], axis=0)        # rows 10, 11
    x12 = jnp.pad(x12, ((0, X12_ROWS - (POOL + KSIZE - 1)),
                        (0, LANES - L_POOL)))                     # (24, 128)

    vmem = pl.BlockSpec(memory_space=pltpu.MemorySpace.VMEM)
    row = pl.pallas_call(
        cnn_kernel,
        out_shape=jax.ShapeDtypeStruct((1, C_PAD), jnp.float32),
        in_specs=[vmem, vmem],
        out_specs=vmem,
    )(x12, p_buf)
    return row[:, :C_OUT].T                                       # (108, 1), metadata-only


def init_params(key):
    # Deterministic PyTorch-style U(-1/sqrt(fan_in), 1/sqrt(fan_in)) init.
    k1, k2, k3, k4, k5, k6 = jax.random.split(key, 6)

    def u(k, shape, fan_in):
        bound = 1.0 / (fan_in ** 0.5)
        return jax.random.uniform(k, shape, jnp.float32, -bound, bound)

    w1 = u(k1, (C_OUT, 1, KSIZE), 1 * KSIZE)   # Conv1d(1, 108, 3).weight
    b1 = u(k2, (C_OUT,), 1 * KSIZE)            # Conv1d bias
    w3 = u(k3, (H1, L_POOL), L_POOL)           # Linear(100, 64).weight
    b3 = u(k4, (H1,), L_POOL)
    w4 = u(k5, (1, H1), H1)                    # Linear(64, 1).weight
    b4 = u(k6, (1,), H1)
    return (w1, b1, w3, b3, w4, b4)


def cnn_reference(x, params):
    # Pure-JAX reference of the PyTorch forward (eval-mode dropout).
    w1, b1, w3, b3, w4, b4 = params
    xv = x[0]
    taps = jnp.stack([xv[t:t + L_CONV] for t in range(KSIZE)], axis=0)   # (3, 1000)
    conv = w1.reshape(C_OUT, KSIZE) @ taps + b1[:, None]                 # (108, 1000)
    act = jnp.maximum(conv, 0.0)
    pooled = act.reshape(C_OUT, L_POOL, POOL).max(axis=-1)               # (108, 100)
    h = jnp.maximum(pooled @ w3.T + b3, 0.0)                             # (108, 64)
    logits = h @ w4.T + b4                                               # (108, 1)
    return jax.nn.softmax(logits, axis=1)                                # == 1.0


if __name__ == "__main__":
    key = jax.random.PRNGKey(0)
    kx, kp = jax.random.split(key)
    x = jax.random.normal(kx, (1, L_IN), jnp.float32)   # unbatched Conv1d input (C=1, L=1002)
    params = init_params(kp)
    p_buf = pack_params(params)

    out = jax.block_until_ready(cnn_forward(x, p_buf))
    ref = cnn_reference(x, params)

    assert out.shape == (C_OUT, 1), out.shape
    assert jnp.allclose(out, ref, atol=1e-5, rtol=1e-5), float(jnp.max(jnp.abs(out - ref)))
    print("KERNEL_OK")
</pallas_src>

<mosaic_0001>
module attributes {stable_mosaic.version = 11 : i64} {
  func.func @cnn_kernel(%arg0: memref<24x128xf32, #tpu.memory_space<vmem>>, %arg1: memref<248x64xf32, #tpu.memory_space<vmem>>, %arg2: memref<1x112xf32, #tpu.memory_space<vmem>>) attributes {dimension_semantics = [], scalar_prefetch = 0 : i64, scratch_operands = 0 : i64, tpu.core_type = #tpu.core_type<tc>} {
    %c0 = arith.constant 0 : index
    %c0_0 = arith.constant 0 : index
    %0 = vector.load %arg0[%c0, %c0_0] : memref<24x128xf32, #tpu.memory_space<vmem>>, vector<24x128xf32>
    %c128 = arith.constant 128 : index
    %c0_1 = arith.constant 0 : index
    %1 = vector.load %arg1[%c128, %c0_1] : memref<248x64xf32, #tpu.memory_space<vmem>>, vector<112x8xf32>
    %c128_2 = arith.constant 128 : index
    %c8 = arith.constant 8 : index
    %2 = vector.load %arg1[%c128_2, %c8] : memref<248x64xf32, #tpu.memory_space<vmem>>, vector<112x1xf32>
    %3 = vector.extract_strided_slice %0 {offsets = [0, 0], sizes = [8, 128], strides = [1, 1]} : vector<24x128xf32> to vector<8x128xf32>
    %cst = arith.constant dense<0.000000e+00> : vector<112x128xf32>
    %4 = tpu.matmul %1, %3, %cst {dimension_numbers = #tpu.dot_dimension_numbers<[1], [0], [0], [1], [0, 0, 1, 1], [], []>} : vector<112x8xf32>, vector<8x128xf32>, vector<112x128xf32> -> vector<112x128xf32>
    %5 = vector.extract_strided_slice %0 {offsets = [1, 0], sizes = [8, 128], strides = [1, 1]} : vector<24x128xf32> to vector<8x128xf32>
    %cst_3 = arith.constant dense<0.000000e+00> : vector<112x128xf32>
    %6 = tpu.matmul %1, %5, %cst_3 {dimension_numbers = #tpu.dot_dimension_numbers<[1], [0], [0], [1], [0, 0, 1, 1], [], []>} : vector<112x8xf32>, vector<8x128xf32>, vector<112x128xf32> -> vector<112x128xf32>
    %7 = arith.maximumf %4, %6 : vector<112x128xf32>
    %8 = vector.extract_strided_slice %0 {offsets = [2, 0], sizes = [8, 128], strides = [1, 1]} : vector<24x128xf32> to vector<8x128xf32>
    %cst_4 = arith.constant dense<0.000000e+00> : vector<112x128xf32>
    %9 = tpu.matmul %1, %8, %cst_4 {dimension_numbers = #tpu.dot_dimension_numbers<[1], [0], [0], [1], [0, 0, 1, 1], [], []>} : vector<112x8xf32>, vector<8x128xf32>, vector<112x128xf32> -> vector<112x128xf32>
    %10 = arith.maximumf %7, %9 : vector<112x128xf32>
    %11 = vector.extract_strided_slice %0 {offsets = [3, 0], sizes = [8, 128], strides = [1, 1]} : vector<24x128xf32> to vector<8x128xf32>
    %cst_5 = arith.constant dense<0.000000e+00> : vector<112x128xf32>
    %12 = tpu.matmul %1, %11, %cst_5 {dimension_numbers = #tpu.dot_dimension_numbers<[1], [0], [0], [1], [0, 0, 1, 1], [], []>} : vector<112x8xf32>, vector<8x128xf32>, vector<112x128xf32> -> vector<112x128xf32>
    %13 = arith.maximumf %10, %12 : vector<112x128xf32>
    %14 = vector.extract_strided_slice %0 {offsets = [4, 0], sizes = [8, 128], strides = [1, 1]} : vector<24x128xf32> to vector<8x128xf32>
    %cst_6 = arith.constant dense<0.000000e+00> : vector<112x128xf32>
    %15 = tpu.matmul %1, %14, %cst_6 {dimension_numbers = #tpu.dot_dimension_numbers<[1], [0], [0], [1], [0, 0, 1, 1], [], []>} : vector<112x8xf32>, vector<8x128xf32>, vector<112x128xf32> -> vector<112x128xf32>
    %16 = arith.maximumf %13, %15 : vector<112x128xf32>
    %17 = vector.extract_strided_slice %0 {offsets = [5, 0], sizes = [8, 128], strides = [1, 1]} : vector<24x128xf32> to vector<8x128xf32>
    %cst_7 = arith.constant dense<0.000000e+00> : vector<112x128xf32>
    %18 = tpu.matmul %1, %17, %cst_7 {dimension_numbers = #tpu.dot_dimension_numbers<[1], [0], [0], [1], [0, 0, 1, 1], [], []>} : vector<112x8xf32>, vector<8x128xf32>, vector<112x128xf32> -> vector<112x128xf32>
    %19 = arith.maximumf %16, %18 : vector<112x128xf32>
    %20 = vector.extract_strided_slice %0 {offsets = [6, 0], sizes = [8, 128], strides = [1, 1]} : vector<24x128xf32> to vector<8x128xf32>
    %cst_8 = arith.constant dense<0.000000e+00> : vector<112x128xf32>
    %21 = tpu.matmul %1, %20, %cst_8 {dimension_numbers = #tpu.dot_dimension_numbers<[1], [0], [0], [1], [0, 0, 1, 1], [], []>} : vector<112x8xf32>, vector<8x128xf32>, vector<112x128xf32> -> vector<112x128xf32>
    %22 = arith.maximumf %19, %21 : vector<112x128xf32>
    %23 = vector.extract_strided_slice %0 {offsets = [7, 0], sizes = [8, 128], strides = [1, 1]} : vector<24x128xf32> to vector<8x128xf32>
    %cst_9 = arith.constant dense<0.000000e+00> : vector<112x128xf32>
    %24 = tpu.matmul %1, %23, %cst_9 {dimension_numbers = #tpu.dot_dimension_numbers<[1], [0], [0], [1], [0, 0, 1, 1], [], []>} : vector<112x8xf32>, vector<8x128xf32>, vector<112x128xf32> -> vector<112x128xf32>
    %25 = arith.maximumf %22, %24 : vector<112x128xf32>
    %26 = vector.extract_strided_slice %0 {offsets = [8, 0], sizes = [8, 128], strides = [1, 1]} : vector<24x128xf32> to vector<8x128xf32>
    %cst_10 = arith.constant dense<0.000000e+00> : vector<112x128xf32>
    %27 = tpu.matmul %1, %26, %cst_10 {dimension_numbers = #tpu.dot_dimension_numbers<[1], [0], [0], [1], [0, 0, 1, 1], [], []>} : vector<112x8xf32>, vector<8x128xf32>, vector<112x128xf32> -> vector<112x128xf32>
    %28 = arith.maximumf %25, %27 : vector<112x128xf32>
    %29 = vector.extract_strided_slice %0 {offsets = [9, 0], sizes = [8, 128], strides = [1, 1]} : vector<24x128xf32> to vector<8x128xf32>
    %cst_11 = arith.constant dense<0.000000e+00> : vector<112x128xf32>
    %30 = tpu.matmul %1, %29, %cst_11 {dimension_numbers = #tpu.dot_dimension_numbers<[1], [0], [0], [1], [0, 0, 1, 1], [], []>} : vector<112x8xf32>, vector<8x128xf32>, vector<112x128xf32> -> vector<112x128xf32>
    %31 = arith.maximumf %28, %30 : vector<112x128xf32>
    %32 = vector.broadcast %2 : vector<112x1xf32> to vector<112x128xf32>
    %33 = arith.addf %31, %32 : vector<112x128xf32>
    %cst_12 = arith.constant 0.000000e+00 : f32
    %34 = vector.broadcast %cst_12 : f32 to vector<112x128xf32>
    %35 = arith.maximumf %33, %34 : vector<112x128xf32>
    %c0_13 = arith.constant 0 : index
    %c0_14 = arith.constant 0 : index
    %36 = vector.load %arg1[%c0_13, %c0_14] : memref<248x64xf32, #tpu.memory_space<vmem>>, vector<128x64xf32>
    %cst_15 = arith.constant dense<0.000000e+00> : vector<112x64xf32>
    %37 = tpu.matmul %35, %36, %cst_15 {dimension_numbers = #tpu.dot_dimension_numbers<[1], [0], [0], [1], [0, 0, 1, 1], [], []>} : vector<112x128xf32>, vector<128x64xf32>, vector<112x64xf32> -> vector<112x64xf32>
    %c240 = arith.constant 240 : index
    %c0_16 = arith.constant 0 : index
    %38 = vector.load %arg1[%c240, %c0_16] : memref<248x64xf32, #tpu.memory_space<vmem>>, vector<1x64xf32>
    %39 = vector.broadcast %38 : vector<1x64xf32> to vector<112x64xf32>
    %40 = arith.addf %37, %39 : vector<112x64xf32>
    %cst_17 = arith.constant 0.000000e+00 : f32
    %41 = vector.broadcast %cst_17 : f32 to vector<112x64xf32>
    %42 = arith.maximumf %40, %41 : vector<112x64xf32>
    %c241 = arith.constant 241 : index
    %c0_18 = arith.constant 0 : index
    %43 = vector.load %arg1[%c241, %c0_18] : memref<248x64xf32, #tpu.memory_space<vmem>>, vector<1x64xf32>
    %cst_19 = arith.constant dense<0.000000e+00> : vector<1x112xf32>
    %44 = tpu.matmul %43, %42, %cst_19 {dimension_numbers = #tpu.dot_dimension_numbers<[1], [1], [0], [0], [0, 0, 1, 0], [], []>} : vector<1x64xf32>, vector<112x64xf32>, vector<1x112xf32> -> vector<1x112xf32>
    %c242 = arith.constant 242 : index
    %c0_20 = arith.constant 0 : index
    %45 = vector.load %arg1[%c242, %c0_20] : memref<248x64xf32, #tpu.memory_space<vmem>>, vector<1x1xf32>
    %46 = vector.broadcast %45 : vector<1x1xf32> to vector<1x112xf32>
    %47 = arith.addf %44, %46 : vector<1x112xf32>
    %48 = arith.subf %47, %47 : vector<1x112xf32>
    %49 = math.exp %48 : vector<1x112xf32>
    %c0_21 = arith.constant 0 : index
    %c0_22 = arith.constant 0 : index
    %50 = vector.load %arg2[%c0_21, %c0_22] : memref<1x112xf32, #tpu.memory_space<vmem>>, vector<1x112xf32>
    tpu.vector_store %arg2[%c0_21, %c0_22], %49 {strides = array<i32>} : memref<1x112xf32, #tpu.memory_space<vmem>>, vector<1x112xf32>,
    return
  }
}

</mosaic_0001>

<llo_original>
// kernel: cnn_forward.1
$region0: #{cnn_forward.1}
  #allocation0 [shape = 'u32[]', space=smem, size = 0x4, offset = 0x4, fixed_abs, tag = 'smem constant byte address 0x4 - core index']
  #allocation1 [shape = 'u32[144,128]{1,0:T(1,128)}', space=vmem, size = 0x12000, scoped, tag = 'internal scratch']
  %s0 = inlined_call_operand.vmem [shape: f32[24,128], index: 0, kind: input, shape index: {}]
  %s1 = inlined_call_operand.vmem [shape: f32[248,64], index: 1, kind: input, shape index: {}]
  %s2 = inlined_call_operand.vmem [shape: f32[1,112], index: 2, kind: output, shape index: {}]
  %s3 = sld [smem:[#allocation0]]
  $region18: #{cnn_forward.1} parent=0
    _
  %s5 = ssub.s32 1, %s3
  %s6 = scalar_select 0, %s5, %s3
  // Predicated region
  $region2: #{cnn_forward.1} parent=0 // pred_check
    _
  $region3: #{cnn_forward.1} parent=0 // pred_check_branch
    %8 = sbr.rel (0) target = $region5
  $region4: #{cnn_forward.1} parent=0 // pred_region
    _
  $region5: #{cnn_forward.1} parent=0 // pred_fallthru
    _
  // Predicated region
  $region6: #{cnn_forward.1} parent=0 // pred_check
    _
  $region7: #{cnn_forward.1} parent=0 // pred_check_branch
    %10 = sbr.rel (0) target = $region9
  $region8: #{cnn_forward.1} parent=0 // pred_region
    _
  $region9: #{cnn_forward.1} parent=0 // pred_fallthru
    _
  %v11 = vld [vmem:[%s0] sm:$0xff]
  %v12 = vld [vmem:[%s0 + $0x8] sm:$0xff]
  %v13 = vld [vmem:[%s0 + $0x10] sm:$0xff]
  %v14 = vld [vmem:[%s1 + $0x80] sm:$0xff]
  %v15 = vld [vmem:[%s1 + $0x88] sm:$0xff]
  %v16 = vld [vmem:[%s1 + $0x90] sm:$0xff]
  %v17 = vld [vmem:[%s1 + $0x98] sm:$0xff]
  %v18 = vld [vmem:[%s1 + $0xa0] sm:$0xff]
  %v19 = vld [vmem:[%s1 + $0xa8] sm:$0xff]
  %v20 = vld [vmem:[%s1 + $0xb0] sm:$0xff]
  %v21 = vld [vmem:[%s1 + $0xb8] sm:$0xff]
  %v22 = vld [vmem:[%s1 + $0xc0] sm:$0xff]
  %v23 = vld [vmem:[%s1 + $0xc8] sm:$0xff]
  %v24 = vld [vmem:[%s1 + $0xd0] sm:$0xff]
  %v25 = vld [vmem:[%s1 + $0xd8] sm:$0xff]
  %v26 = vld [vmem:[%s1 + $0xe0] sm:$0xff]
  %v27 = vld [vmem:[%s1 + $0xe8] sm:$0xff]
  %vm28 = vcmask 64512
  %v30 = vsel %vm28, %v14, 0
  %v33 = vsel %vm28, %v15, 0
  %v36 = vsel %vm28, %v16, 0
  %v39 = vsel %vm28, %v17, 0
  %v42 = vsel %vm28, %v18, 0
  %v45 = vsel %vm28, %v19, 0
  %v48 = vsel %vm28, %v20, 0
  %v51 = vsel %vm28, %v21, 0
  %v54 = vsel %vm28, %v22, 0
  %v57 = vsel %vm28, %v23, 0
  %v60 = vsel %vm28, %v24, 0
  %v63 = vsel %vm28, %v25, 0
  %v66 = vsel %vm28, %v26, 0
  %v69 = vsel %vm28, %v27, 0
  %71 = vmatprep.subr.mxu0 0.0
  %72 = vmatpush1.msra.mxu0 %v11
  %73 = vmatprep.subr.mxu0 0.0
  %74 = vmatpush1.msra.mxu0 0.0
  %75 = vmatprep.subr.mxu0 0.0
  %76 = vmatpush1.msra.mxu0 0.0
  %77 = vmatprep.subr.mxu0 0.0
  %78 = vmatpush1.msra.mxu0 0.0
  %79 = vmatprep.subr.mxu0 0.0
  %80 = vmatpush1.msra.mxu0 0.0
  %81 = vmatprep.subr.mxu0 0.0
  %82 = vmatpush1.msra.mxu0 0.0
  %83 = vmatprep.subr.mxu0 0.0
  %84 = vmatpush1.msra.mxu0 0.0
  %85 = vmatprep.subr.mxu0 0.0
  %86 = vmatpush1.msra.mxu0 0.0
  %87 = vmatprep.subr.mxu0 0.0
  %88 = vmatpush1.msra.mxu0 0.0
  %89 = vmatprep.subr.mxu0 0.0
  %90 = vmatpush1.msra.mxu0 0.0
  %91 = vmatprep.subr.mxu0 0.0
  %92 = vmatpush1.msra.mxu0 0.0
  %93 = vmatprep.subr.mxu0 0.0
  %94 = vmatpush1.msra.mxu0 0.0
  %95 = vmatprep.subr.mxu0 0.0
  %96 = vmatpush1.msra.mxu0 0.0
  %97 = vmatprep.subr.mxu0 0.0
  %98 = vmatpush1.msra.mxu0 0.0
  %99 = vmatprep.subr.mxu0 0.0
  %100 = vmatpush1.msra.mxu0 0.0
  %101 = vmatprep.subr.mxu0 0.0
  %102 = vmatpush1.msra.mxu0 0.0
  %103 = vmatprep.subr.mxu0 0.0
  %104 = vmatpush1.msra.mxu0 0.0
  %105 = vmatprep.subr.mxu0 0.0
  %106 = vmatpush1.msra.mxu0 0.0
  %107 = vmatprep.subr.mxu0 0.0
  %108 = vmatpush1.msra.mxu0 0.0
  %109 = vmatprep.subr.mxu0 0.0
  %110 = vmatpush1.msra.mxu0 0.0
  %111 = vmatprep.subr.mxu0 0.0
  %112 = vmatpush1.msra.mxu0 0.0
  %113 = vmatprep.subr.mxu0 0.0
  %114 = vmatpush1.msra.mxu0 0.0
  %115 = vmatprep.subr.mxu0 0.0
  %116 = vmatpush1.msra.mxu0 0.0
  %117 = vmatprep.subr.mxu0 0.0
  %118 = vmatpush1.msra.mxu0 0.0
  %119 = vmatprep.subr.mxu0 0.0
  %120 = vmatpush1.msra.mxu0 0.0
  %121 = vmatprep.subr.mxu0 0.0
  %122 = vmatpush1.msra.mxu0 0.0
  %123 = vmatprep.subr.mxu0 0.0
  %124 = vmatpush1.msra.mxu0 0.0
  %125 = vmatprep.subr.mxu0 0.0
  %126 = vmatpush1.msra.mxu0 0.0
  %127 = vmatprep.subr.mxu0 0.0
  %128 = vmatpush1.msra.mxu0 0.0
  %129 = vmatprep.subr.mxu0 0.0
  %130 = vmatpush1.msra.mxu0 0.0
  %131 = vmatprep.subr.mxu0 0.0
  %132 = vmatpush1.msra.mxu0 0.0
  %133 = vmatprep.subr.mxu0 0.0
  %134 = vmatpush1.msra.mxu0 0.0
  %135 = vmatprep.mubr.f32.mxu0 0.0
  %136 = vmatmul.mubr.f32.gmra.mrb[0].mxu0 %v30
  %v137 = vpop.f32.mrb[0].mxu0
  %v138 = vadd.f32 0.0, %v137
  %v139 = vpop.f32.mrb[0].mxu0
  %140 = vmatprep.mubr.f32.mxu0 0.0
  %141 = vmatmul.mubr.f32.gmra.mrb[0].mxu0 %v33
  %v142 = vpop.f32.mrb[0].mxu0
  %v143 = vadd.f32 0.0, %v142
  %v144 = vpop.f32.mrb[0].mxu0
  %145 = vmatprep.mubr.f32.mxu0 0.0
  %146 = vmatmul.mubr.f32.gmra.mrb[0].mxu0 %v36
  %v147 = vpop.f32.mrb[0].mxu0
  %v148 = vadd.f32 0.0, %v147
  %v149 = vpop.f32.mrb[0].mxu0
  %150 = vmatprep.mubr.f32.mxu0 0.0
  %151 = vmatmul.mubr.f32.gmra.mrb[0].mxu0 %v39
  %v152 = vpop.f32.mrb[0].mxu0
  %v153 = vadd.f32 0.0, %v152
  %v154 = vpop.f32.mrb[0].mxu0
  %155 = vmatprep.mubr.f32.mxu0 0.0
  %156 = vmatmul.mubr.f32.gmra.mrb[0].mxu0 %v42
  %v157 = vpop.f32.mrb[0].mxu0
  %v158 = vadd.f32 0.0, %v157
  %v159 = vpop.f32.mrb[0].mxu0
  %160 = vmatprep.mubr.f32.mxu0 0.0
  %161 = vmatmul.mubr.f32.gmra.mrb[0].mxu0 %v45
  %v162 = vpop.f32.mrb[0].mxu0
  %v163 = vadd.f32 0.0, %v162
  %v164 = vpop.f32.mrb[0].mxu0
  %165 = vmatprep.mubr.f32.mxu0 0.0
  %166 = vmatmul.mubr.f32.gmra.mrb[0].mxu0 %v48
  %v167 = vpop.f32.mrb[0].mxu0
  %v168 = vadd.f32 0.0, %v167
  %v169 = vpop.f32.mrb[0].mxu0
  %170 = vmatprep.mubr.f32.mxu0 0.0
  %171 = vmatmul.mubr.f32.gmra.mrb[0].mxu0 %v51
  %v172 = vpop.f32.mrb[0].mxu0
  %v173 = vadd.f32 0.0, %v172
  %v174 = vpop.f32.mrb[0].mxu0
  %175 = vmatprep.mubr.f32.mxu0 0.0
  %176 = vmatmul.mubr.f32.gmra.mrb[0].mxu0 %v54
  %v177 = vpop.f32.mrb[0].mxu0
  %v178 = vadd.f32 0.0, %v177
  %v179 = vpop.f32.mrb[0].mxu0
  %180 = vmatprep.mubr.f32.mxu0 0.0
  %181 = vmatmul.mubr.f32.gmra.mrb[0].mxu0 %v57
  %v182 = vpop.f32.mrb[0].mxu0
  %v183 = vadd.f32 0.0, %v182
  %v184 = vpop.f32.mrb[0].mxu0
  %185 = vmatprep.mubr.f32.mxu0 0.0
  %186 = vmatmul.mubr.f32.gmra.mrb[0].mxu0 %v60
  %v187 = vpop.f32.mrb[0].mxu0
  %v188 = vadd.f32 0.0, %v187
  %v189 = vpop.f32.mrb[0].mxu0
  %190 = vmatprep.mubr.f32.mxu0 0.0
  %191 = vmatmul.mubr.f32.gmra.mrb[0].mxu0 %v63
  %v192 = vpop.f32.mrb[0].mxu0
  %v193 = vadd.f32 0.0, %v192
  %v194 = vpop.f32.mrb[0].mxu0
  %195 = vmatprep.mubr.f32.mxu0 0.0
  %196 = vmatmul.mubr.f32.gmra.mrb[0].mxu0 %v66
  %v197 = vpop.f32.mrb[0].mxu0
  %v198 = vadd.f32 0.0, %v197
  %v199 = vpop.f32.mrb[0].mxu0
  %200 = vmatprep.mubr.f32.mxu0 0.0
  %201 = vmatmul.mubr.f32.gmra.mrb[0].mxu0 %v69
  %v202 = vpop.f32.mrb[0].mxu0
  %v203 = vadd.f32 0.0, %v202
  %v204 = vpop.f32.mrb[0].mxu0
  %205 = vdwg.mxu0
  %vm208 = vcmask 1046528
  %v209 = vrot.slane %v11, 1
  %v210 = vrot.slane %v12, 1
  %v211 = vsel %vm208, %v209, %v210
  %213 = vmatprep.subr.mxu0 0.0
  %214 = vmatpush1.msra.mxu0 %v211
  %215 = vmatprep.subr.mxu0 0.0
  %216 = vmatpush1.msra.mxu0 0.0
  %217 = vmatprep.subr.mxu0 0.0
  %218 = vmatpush1.msra.mxu0 0.0
  %219 = vmatprep.subr.mxu0 0.0
  %220 = vmatpush1.msra.mxu0 0.0
  %221 = vmatprep.subr.mxu0 0.0
  %222 = vmatpush1.msra.mxu0 0.0
  %223 = vmatprep.subr.mxu0 0.0
  %224 = vmatpush1.msra.mxu0 0.0
  %225 = vmatprep.subr.mxu0 0.0
  %226 = vmatpush1.msra.mxu0 0.0
  %227 = vmatprep.subr.mxu0 0.0
  %228 = vmatpush1.msra.mxu0 0.0
  %229 = vmatprep.subr.mxu0 0.0
  %230 = vmatpush1.msra.mxu0 0.0
  %231 = vmatprep.subr.mxu0 0.0
  %232 = vmatpush1.msra.mxu0 0.0
  %233 = vmatprep.subr.mxu0 0.0
  %234 = vmatpush1.msra.mxu0 0.0
  %235 = vmatprep.subr.mxu0 0.0
  %236 = vmatpush1.msra.mxu0 0.0
  %237 = vmatprep.subr.mxu0 0.0
  %238 = vmatpush1.msra.mxu0 0.0
  %239 = vmatprep.subr.mxu0 0.0
  %240 = vmatpush1.msra.mxu0 0.0
  %241 = vmatprep.subr.mxu0 0.0
  %242 = vmatpush1.msra.mxu0 0.0
  %243 = vmatprep.subr.mxu0 0.0
  %244 = vmatpush1.msra.mxu0 0.0
  %245 = vmatprep.subr.mxu0 0.0
  %246 = vmatpush1.msra.mxu0 0.0
  %247 = vmatprep.subr.mxu0 0.0
  %248 = vmatpush1.msra.mxu0 0.0
  %249 = vmatprep.subr.mxu0 0.0
  %250 = vmatpush1.msra.mxu0 0.0
  %251 = vmatprep.subr.mxu0 0.0
  %252 = vmatpush1.msra.mxu0 0.0
  %253 = vmatprep.subr.mxu0 0.0
  %254 = vmatpush1.msra.mxu0 0.0
  %255 = vmatprep.subr.mxu0 0.0
  %256 = vmatpush1.msra.mxu0 0.0
  %257 = vmatprep.subr.mxu0 0.0
  %258 = vmatpush1.msra.mxu0 0.0
  %259 = vmatprep.subr.mxu0 0.0
  %260 = vmatpush1.msra.mxu0 0.0
  %261 = vmatprep.subr.mxu0 0.0
  %262 = vmatpush1.msra.mxu0 0.0
  %263 = vmatprep.subr.mxu0 0.0
  %264 = vmatpush1.msra.mxu0 0.0
  %265 = vmatprep.subr.mxu0 0.0
  %266 = vmatpush1.msra.mxu0 0.0
  %267 = vmatprep.subr.mxu0 0.0
  %268 = vmatpush1.msra.mxu0 0.0
  %269 = vmatprep.subr.mxu0 0.0
  %270 = vmatpush1.msra.mxu0 0.0
  %271 = vmatprep.subr.mxu0 0.0
  %272 = vmatpush1.msra.mxu0 0.0
  %273 = vmatprep.subr.mxu0 0.0
  %274 = vmatpush1.msra.mxu0 0.0
  %275 = vmatprep.subr.mxu0 0.0
  %276 = vmatpush1.msra.mxu0 0.0
  %277 = vmatprep.mubr.f32.mxu0 0.0
  %278 = vmatmul.mubr.f32.gmra.mrb[0].mxu0 %v30
  %v279 = vpop.f32.mrb[0].mxu0
  %v280 = vadd.f32 0.0, %v279
  %v281 = vpop.f32.mrb[0].mxu0
  %282 = vmatprep.mubr.f32.mxu0 0.0
  %283 = vmatmul.mubr.f32.gmra.mrb[0].mxu0 %v33
  %v284 = vpop.f32.mrb[0].mxu0
  %v285 = vadd.f32 0.0, %v284
  %v286 = vpop.f32.mrb[0].mxu0
  %287 = vmatprep.mubr.f32.mxu0 0.0
  %288 = vmatmul.mubr.f32.gmra.mrb[0].mxu0 %v36
  %v289 = vpop.f32.mrb[0].mxu0
  %v290 = vadd.f32 0.0, %v289
  %v291 = vpop.f32.mrb[0].mxu0
  %292 = vmatprep.mubr.f32.mxu0 0.0
  %293 = vmatmul.mubr.f32.gmra.mrb[0].mxu0 %v39
  %v294 = vpop.f32.mrb[0].mxu0
  %v295 = vadd.f32 0.0, %v294
  %v296 = vpop.f32.mrb[0].mxu0
  %297 = vmatprep.mubr.f32.mxu0 0.0
  %298 = vmatmul.mubr.f32.gmra.mrb[0].mxu0 %v42
  %v299 = vpop.f32.mrb[0].mxu0
  %v300 = vadd.f32 0.0, %v299
  %v301 = vpop.f32.mrb[0].mxu0
  %302 = vmatprep.mubr.f32.mxu0 0.0
  %303 = vmatmul.mubr.f32.gmra.mrb[0].mxu0 %v45
  %v304 = vpop.f32.mrb[0].mxu0
  %v305 = vadd.f32 0.0, %v304
  %v306 = vpop.f32.mrb[0].mxu0
  %307 = vmatprep.mubr.f32.mxu0 0.0
  %308 = vmatmul.mubr.f32.gmra.mrb[0].mxu0 %v48
  %v309 = vpop.f32.mrb[0].mxu0
  %v310 = vadd.f32 0.0, %v309
  %v311 = vpop.f32.mrb[0].mxu0
  %312 = vmatprep.mubr.f32.mxu0 0.0
  %313 = vmatmul.mubr.f32.gmra.mrb[0].mxu0 %v51
  %v314 = vpop.f32.mrb[0].mxu0
  %v315 = vadd.f32 0.0, %v314
  %v316 = vpop.f32.mrb[0].mxu0
  %317 = vmatprep.mubr.f32.mxu0 0.0
  %318 = vmatmul.mubr.f32.gmra.mrb[0].mxu0 %v54
  %v319 = vpop.f32.mrb[0].mxu0
  %v320 = vadd.f32 0.0, %v319
  %v321 = vpop.f32.mrb[0].mxu0
  %322 = vmatprep.mubr.f32.mxu0 0.0
  %323 = vmatmul.mubr.f32.gmra.mrb[0].mxu0 %v57
  %v324 = vpop.f32.mrb[0].mxu0
  %v325 = vadd.f32 0.0, %v324
  %v326 = vpop.f32.mrb[0].mxu0
  %327 = vmatprep.mubr.f32.mxu0 0.0
  %328 = vmatmul.mubr.f32.gmra.mrb[0].mxu0 %v60
  %v329 = vpop.f32.mrb[0].mxu0
  %v330 = vadd.f32 0.0, %v329
  %v331 = vpop.f32.mrb[0].mxu0
  %332 = vmatprep.mubr.f32.mxu0 0.0
  %333 = vmatmul.mubr.f32.gmra.mrb[0].mxu0 %v63
  %v334 = vpop.f32.mrb[0].mxu0
  %v335 = vadd.f32 0.0, %v334
  %v336 = vpop.f32.mrb[0].mxu0
  %337 = vmatprep.mubr.f32.mxu0 0.0
  %338 = vmatmul.mubr.f32.gmra.mrb[0].mxu0 %v66
  %v339 = vpop.f32.mrb[0].mxu0
  %v340 = vadd.f32 0.0, %v339
  %v341 = vpop.f32.mrb[0].mxu0
  %342 = vmatprep.mubr.f32.mxu0 0.0
  %343 = vmatmul.mubr.f32.gmra.mrb[0].mxu0 %v69
  %v344 = vpop.f32.mrb[0].mxu0
  %v345 = vadd.f32 0.0, %v344
  %v346 = vpop.f32.mrb[0].mxu0
  %347 = vdwg.mxu0
  %v348 = vmax.f32 %v138, %v280
  %v349 = vmax.f32 %v143, %v285
  %v350 = vmax.f32 %v148, %v290
  %v351 = vmax.f32 %v153, %v295
  %v352 = vmax.f32 %v158, %v300
  %v353 = vmax.f32 %v163, %v305
  %v354 = vmax.f32 %v168, %v310
  %v355 = vmax.f32 %v173, %v315
  %v356 = vmax.f32 %v178, %v320
  %v357 = vmax.f32 %v183, %v325
  %v358 = vmax.f32 %v188, %v330
  %v359 = vmax.f32 %v193, %v335
  %v360 = vmax.f32 %v198, %v340
  %v361 = vmax.f32 %v203, %v345
  %vm362 = vcmask 1045504
  %v363 = vrot.slane %v11, 2
  %v364 = vrot.slane %v12, 2
  %v365 = vsel %vm362, %v363, %v364
  %367 = vmatprep.subr.mxu0 0.0
  %368 = vmatpush1.msra.mxu0 %v365
  %369 = vmatprep.subr.mxu0 0.0
  %370 = vmatpush1.msra.mxu0 0.0
  %371 = vmatprep.subr.mxu0 0.0
  %372 = vmatpush1.msra.mxu0 0.0
  %373 = vmatprep.subr.mxu0 0.0
  %374 = vmatpush1.msra.mxu0 0.0
  %375 = vmatprep.subr.mxu0 0.0
  %376 = vmatpush1.msra.mxu0 0.0
  %377 = vmatprep.subr.mxu0 0.0
  %378 = vmatpush1.msra.mxu0 0.0
  %379 = vmatprep.subr.mxu0 0.0
  %380 = vmatpush1.msra.mxu0 0.0
  %381 = vmatprep.subr.mxu0 0.0
  %382 = vmatpush1.msra.mxu0 0.0
  %383 = vmatprep.subr.mxu0 0.0
  %384 = vmatpush1.msra.mxu0 0.0
  %385 = vmatprep.subr.mxu0 0.0
  %386 = vmatpush1.msra.mxu0 0.0
  %387 = vmatprep.subr.mxu0 0.0
  %388 = vmatpush1.msra.mxu0 0.0
  %389 = vmatprep.subr.mxu0 0.0
  %390 = vmatpush1.msra.mxu0 0.0
  %391 = vmatprep.subr.mxu0 0.0
  %392 = vmatpush1.msra.mxu0 0.0
  %393 = vmatprep.subr.mxu0 0.0
  %394 = vmatpush1.msra.mxu0 0.0
  %395 = vmatprep.subr.mxu0 0.0
  %396 = vmatpush1.msra.mxu0 0.0
  %397 = vmatprep.subr.mxu0 0.0
  %398 = vmatpush1.msra.mxu0 0.0
  %399 = vmatprep.subr.mxu0 0.0
  %400 = vmatpush1.msra.mxu0 0.0
  %401 = vmatprep.subr.mxu0 0.0
  %402 = vmatpush1.msra.mxu0 0.0
  %403 = vmatprep.subr.mxu0 0.0
  %404 = vmatpush1.msra.mxu0 0.0
  %405 = vmatprep.subr.mxu0 0.0
  %406 = vmatpush1.msra.mxu0 0.0
  %407 = vmatprep.subr.mxu0 0.0
  %408 = vmatpush1.msra.mxu0 0.0
  %409 = vmatprep.subr.mxu0 0.0
  %410 = vmatpush1.msra.mxu0 0.0
  %411 = vmatprep.subr.mxu0 0.0
  %412 = vmatpush1.msra.mxu0 0.0
  %413 = vmatprep.subr.mxu0 0.0
  %414 = vmatpush1.msra.mxu0 0.0
  %415 = vmatprep.subr.mxu0 0.0
  %416 = vmatpush1.msra.mxu0 0.0
  %417 = vmatprep.subr.mxu0 0.0
  %418 = vmatpush1.msra.mxu0 0.0
  %419 = vmatprep.subr.mxu0 0.0
  %420 = vmatpush1.msra.mxu0 0.0
  %421 = vmatprep.subr.mxu0 0.0
  %422 = vmatpush1.msra.mxu0 0.0
  %423 = vmatprep.subr.mxu0 0.0
  %424 = vmatpush1.msra.mxu0 0.0
  %425 = vmatprep.subr.mxu0 0.0
  %426 = vmatpush1.msra.mxu0 0.0
  %427 = vmatprep.subr.mxu0 0.0
  %428 = vmatpush1.msra.mxu0 0.0
  %429 = vmatprep.subr.mxu0 0.0
  %430 = vmatpush1.msra.mxu0 0.0
  %431 = vmatprep.mubr.f32.mxu0 0.0
  %432 = vmatmul.mubr.f32.gmra.mrb[0].mxu0 %v30
  %v433 = vpop.f32.mrb[0].mxu0
  %v434 = vadd.f32 0.0, %v433
  %v435 = vpop.f32.mrb[0].mxu0
  %436 = vmatprep.mubr.f32.mxu0 0.0
  %437 = vmatmul.mubr.f32.gmra.mrb[0].mxu0 %v33
  %v438 = vpop.f32.mrb[0].mxu0
  %v439 = vadd.f32 0.0, %v438
  %v440 = vpop.f32.mrb[0].mxu0
  %441 = vmatprep.mubr.f32.mxu0 0.0
  %442 = vmatmul.mubr.f32.gmra.mrb[0].mxu0 %v36
  %v443 = vpop.f32.mrb[0].mxu0
  %v444 = vadd.f32 0.0, %v443
  %v445 = vpop.f32.mrb[0].mxu0
  %446 = vmatprep.mubr.f32.mxu0 0.0
  %447 = vmatmul.mubr.f32.gmra.mrb[0].mxu0 %v39
  %v448 = vpop.f32.mrb[0].mxu0
  %v449 = vadd.f32 0.0, %v448
  %v450 = vpop.f32.mrb[0].mxu0
  %451 = vmatprep.mubr.f32.mxu0 0.0
  %452 = vmatmul.mubr.f32.gmra.mrb[0].mxu0 %v42
  %v453 = vpop.f32.mrb[0].mxu0
  %v454 = vadd.f32 0.0, %v453
  %v455 = vpop.f32.mrb[0].mxu0
  %456 = vmatprep.mubr.f32.mxu0 0.0
  %457 = vmatmul.mubr.f32.gmra.mrb[0].mxu0 %v45
  %v458 = vpop.f32.mrb[0].mxu0
  %v459 = vadd.f32 0.0, %v458
  %v460 = vpop.f32.mrb[0].mxu0
  %461 = vmatprep.mubr.f32.mxu0 0.0
  %462 = vmatmul.mubr.f32.gmra.mrb[0].mxu0 %v48
  %v463 = vpop.f32.mrb[0].mxu0
  %v464 = vadd.f32 0.0, %v463
  %v465 = vpop.f32.mrb[0].mxu0
  %466 = vmatprep.mubr.f32.mxu0 0.0
  %467 = vmatmul.mubr.f32.gmra.mrb[0].mxu0 %v51
  %v468 = vpop.f32.mrb[0].mxu0
  %v469 = vadd.f32 0.0, %v468
  %v470 = vpop.f32.mrb[0].mxu0
  %471 = vmatprep.mubr.f32.mxu0 0.0
  %472 = vmatmul.mubr.f32.gmra.mrb[0].mxu0 %v54
  %v473 = vpop.f32.mrb[0].mxu0
  %v474 = vadd.f32 0.0, %v473
  %v475 = vpop.f32.mrb[0].mxu0
  %476 = vmatprep.mubr.f32.mxu0 0.0
  %477 = vmatmul.mubr.f32.gmra.mrb[0].mxu0 %v57
  %v478 = vpop.f32.mrb[0].mxu0
  %v479 = vadd.f32 0.0, %v478
  %v480 = vpop.f32.mrb[0].mxu0
  %481 = vmatprep.mubr.f32.mxu0 0.0
  %482 = vmatmul.mubr.f32.gmra.mrb[0].mxu0 %v60
  %v483 = vpop.f32.mrb[0].mxu0
  %v484 = vadd.f32 0.0, %v483
  %v485 = vpop.f32.mrb[0].mxu0
  %486 = vmatprep.mubr.f32.mxu0 0.0
  %487 = vmatmul.mubr.f32.gmra.mrb[0].mxu0 %v63
  %v488 = vpop.f32.mrb[0].mxu0
  %v489 = vadd.f32 0.0, %v488
  %v490 = vpop.f32.mrb[0].mxu0
  %491 = vmatprep.mubr.f32.mxu0 0.0
  %492 = vmatmul.mubr.f32.gmra.mrb[0].mxu0 %v66
  %v493 = vpop.f32.mrb[0].mxu0
  %v494 = vadd.f32 0.0, %v493
  %v495 = vpop.f32.mrb[0].mxu0
  %496 = vmatprep.mubr.f32.mxu0 0.0
  %497 = vmatmul.mubr.f32.gmra.mrb[0].mxu0 %v69
  %v498 = vpop.f32.mrb[0].mxu0
  %v499 = vadd.f32 0.0, %v498
  %v500 = vpop.f32.mrb[0].mxu0
  %501 = vdwg.mxu0
  %v502 = vmax.f32 %v348, %v434
  %v503 = vmax.f32 %v349, %v439
  %v504 = vmax.f32 %v350, %v444
  %v505 = vmax.f32 %v351, %v449
  %v506 = vmax.f32 %v352, %v454
  %v507 = vmax.f32 %v353, %v459
  %v508 = vmax.f32 %v354, %v464
  %v509 = vmax.f32 %v355, %v469
  %v510 = vmax.f32 %v356, %v474
  %v511 = vmax.f32 %v357, %v479
  %v512 = vmax.f32 %v358, %v484
  %v513 = vmax.f32 %v359, %v489
  %v514 = vmax.f32 %v360, %v494
  %v515 = vmax.f32 %v361, %v499
  %vm516 = vcmask 1044480
  %v517 = vrot.slane %v11, 3
  %v518 = vrot.slane %v12, 3
  %v519 = vsel %vm516, %v517, %v518
  %521 = vmatprep.subr.mxu0 0.0
  %522 = vmatpush1.msra.mxu0 %v519
  %523 = vmatprep.subr.mxu0 0.0
  %524 = vmatpush1.msra.mxu0 0.0
  %525 = vmatprep.subr.mxu0 0.0
  %526 = vmatpush1.msra.mxu0 0.0
  %527 = vmatprep.subr.mxu0 0.0
  %528 = vmatpush1.msra.mxu0 0.0
  %529 = vmatprep.subr.mxu0 0.0
  %530 = vmatpush1.msra.mxu0 0.0
  %531 = vmatprep.subr.mxu0 0.0
  %532 = vmatpush1.msra.mxu0 0.0
  %533 = vmatprep.subr.mxu0 0.0
  %534 = vmatpush1.msra.mxu0 0.0
  %535 = vmatprep.subr.mxu0 0.0
  %536 = vmatpush1.msra.mxu0 0.0
  %537 = vmatprep.subr.mxu0 0.0
  %538 = vmatpush1.msra.mxu0 0.0
  %539 = vmatprep.subr.mxu0 0.0
  %540 = vmatpush1.msra.mxu0 0.0
  %541 = vmatprep.subr.mxu0 0.0
  %542 = vmatpush1.msra.mxu0 0.0
  %543 = vmatprep.subr.mxu0 0.0
  %544 = vmatpush1.msra.mxu0 0.0
  %545 = vmatprep.subr.mxu0 0.0
  %546 = vmatpush1.msra.mxu0 0.0
  %547 = vmatprep.subr.mxu0 0.0
  %548 = vmatpush1.msra.mxu0 0.0
  %549 = vmatprep.subr.mxu0 0.0
  %550 = vmatpush1.msra.mxu0 0.0
  %551 = vmatprep.subr.mxu0 0.0
  %552 = vmatpush1.msra.mxu0 0.0
  %553 = vmatprep.subr.mxu0 0.0
  %554 = vmatpush1.msra.mxu0 0.0
  %555 = vmatprep.subr.mxu0 0.0
  %556 = vmatpush1.msra.mxu0 0.0
  %557 = vmatprep.subr.mxu0 0.0
  %558 = vmatpush1.msra.mxu0 0.0
  %559 = vmatprep.subr.mxu0 0.0
  %560 = vmatpush1.msra.mxu0 0.0
  %561 = vmatprep.subr.mxu0 0.0
  %562 = vmatpush1.msra.mxu0 0.0
  %563 = vmatprep.subr.mxu0 0.0
  %564 = vmatpush1.msra.mxu0 0.0
  %565 = vmatprep.subr.mxu0 0.0
  %566 = vmatpush1.msra.mxu0 0.0
  %567 = vmatprep.subr.mxu0 0.0
  %568 = vmatpush1.msra.mxu0 0.0
  %569 = vmatprep.subr.mxu0 0.0
  %570 = vmatpush1.msra.mxu0 0.0
  %571 = vmatprep.subr.mxu0 0.0
  %572 = vmatpush1.msra.mxu0 0.0
  %573 = vmatprep.subr.mxu0 0.0
  %574 = vmatpush1.msra.mxu0 0.0
  %575 = vmatprep.subr.mxu0 0.0
  %576 = vmatpush1.msra.mxu0 0.0
  %577 = vmatprep.subr.mxu0 0.0
  %578 = vmatpush1.msra.mxu0 0.0
  %579 = vmatprep.subr.mxu0 0.0
  %580 = vmatpush1.msra.mxu0 0.0
  %581 = vmatprep.subr.mxu0 0.0
  %582 = vmatpush1.msra.mxu0 0.0
  %583 = vmatprep.subr.mxu0 0.0
  %584 = vmatpush1.msra.mxu0 0.0
  %585 = vmatprep.mubr.f32.mxu0 0.0
  %586 = vmatmul.mubr.f32.gmra.mrb[0].mxu0 %v30
  %v587 = vpop.f32.mrb[0].mxu0
  %v588 = vadd.f32 0.0, %v587
  %v589 = vpop.f32.mrb[0].mxu0
  %590 = vmatprep.mubr.f32.mxu0 0.0
  %591 = vmatmul.mubr.f32.gmra.mrb[0].mxu0 %v33
  %v592 = vpop.f32.mrb[0].mxu0
  %v593 = vadd.f32 0.0, %v592
  %v594 = vpop.f32.mrb[0].mxu0
  %595 = vmatprep.mubr.f32.mxu0 0.0
  %596 = vmatmul.mubr.f32.gmra.mrb[0].mxu0 %v36
  %v597 = vpop.f32.mrb[0].mxu0
  %v598 = vadd.f32 0.0, %v597
  %v599 = vpop.f32.mrb[0].mxu0
  %600 = vmatprep.mubr.f32.mxu0 0.0
  %601 = vmatmul.mubr.f32.gmra.mrb[0].mxu0 %v39
  %v602 = vpop.f32.mrb[0].mxu0
  %v603 = vadd.f32 0.0, %v602
  %v604 = vpop.f32.mrb[0].mxu0
  %605 = vmatprep.mubr.f32.mxu0 0.0
  %606 = vmatmul.mubr.f32.gmra.mrb[0].mxu0 %v42
  %v607 = vpop.f32.mrb[0].mxu0
  %v608 = vadd.f32 0.0, %v607
  %v609 = vpop.f32.mrb[0].mxu0
  %610 = vmatprep.mubr.f32.mxu0 0.0
  %611 = vmatmul.mubr.f32.gmra.mrb[0].mxu0 %v45
  %v612 = vpop.f32.mrb[0].mxu0
  %v613 = vadd.f32 0.0, %v612
  %v614 = vpop.f32.mrb[0].mxu0
  %615 = vmatprep.mubr.f32.mxu0 0.0
  %616 = vmatmul.mubr.f32.gmra.mrb[0].mxu0 %v48
  %v617 = vpop.f32.mrb[0].mxu0
  %v618 = vadd.f32 0.0, %v617
  %v619 = vpop.f32.mrb[0].mxu0
  %620 = vmatprep.mubr.f32.mxu0 0.0
  %621 = vmatmul.mubr.f32.gmra.mrb[0].mxu0 %v51
  %v622 = vpop.f32.mrb[0].mxu0
  %v623 = vadd.f32 0.0, %v622
  %v624 = vpop.f32.mrb[0].mxu0
  %625 = vmatprep.mubr.f32.mxu0 0.0
  %626 = vmatmul.mubr.f32.gmra.mrb[0].mxu0 %v54
  %v627 = vpop.f32.mrb[0].mxu0
  %v628 = vadd.f32 0.0, %v627
  %v629 = vpop.f32.mrb[0].mxu0
  %630 = vmatprep.mubr.f32.mxu0 0.0
  %631 = vmatmul.mubr.f32.gmra.mrb[0].mxu0 %v57
  %v632 = vpop.f32.mrb[0].mxu0
  %v633 = vadd.f32 0.0, %v632
  %v634 = vpop.f32.mrb[0].mxu0
  %635 = vmatprep.mubr.f32.mxu0 0.0
  %636 = vmatmul.mubr.f32.gmra.mrb[0].mxu0 %v60
  %v637 = vpop.f32.mrb[0].mxu0
  %v638 = vadd.f32 0.0, %v637
  %v639 = vpop.f32.mrb[0].mxu0
  %640 = vmatprep.mubr.f32.mxu0 0.0
  %641 = vmatmul.mubr.f32.gmra.mrb[0].mxu0 %v63
  %v642 = vpop.f32.mrb[0].mxu0
  %v643 = vadd.f32 0.0, %v642
  %v644 = vpop.f32.mrb[0].mxu0
  %645 = vmatprep.mubr.f32.mxu0 0.0
  %646 = vmatmul.mubr.f32.gmra.mrb[0].mxu0 %v66
  %v647 = vpop.f32.mrb[0].mxu0
  %v648 = vadd.f32 0.0, %v647
  %v649 = vpop.f32.mrb[0].mxu0
  %650 = vmatprep.mubr.f32.mxu0 0.0
  %651 = vmatmul.mubr.f32.gmra.mrb[0].mxu0 %v69
  %v652 = vpop.f32.mrb[0].mxu0
  %v653 = vadd.f32 0.0, %v652
  %v654 = vpop.f32.mrb[0].mxu0
  %655 = vdwg.mxu0
  %v656 = vmax.f32 %v502, %v588
  %v657 = vmax.f32 %v503, %v593
  %v658 = vmax.f32 %v504, %v598
  %v659 = vmax.f32 %v505, %v603
  %v660 = vmax.f32 %v506, %v608
  %v661 = vmax.f32 %v507, %v613
  %v662 = vmax.f32 %v508, %v618
  %v663 = vmax.f32 %v509, %v623
  %v664 = vmax.f32 %v510, %v628
  %v665 = vmax.f32 %v511, %v633
  %v666 = vmax.f32 %v512, %v638
  %v667 = vmax.f32 %v513, %v643
  %v668 = vmax.f32 %v514, %v648
  %v669 = vmax.f32 %v515, %v653
  %vm670 = vcmask 1043456
  %v671 = vrot.slane %v11, 4
  %v672 = vrot.slane %v12, 4
  %v673 = vsel %vm670, %v671, %v672
  %675 = vmatprep.subr.mxu0 0.0
  %676 = vmatpush1.msra.mxu0 %v673
  %677 = vmatprep.subr.mxu0 0.0
  %678 = vmatpush1.msra.mxu0 0.0
  %679 = vmatprep.subr.mxu0 0.0
  %680 = vmatpush1.msra.mxu0 0.0
  %681 = vmatprep.subr.mxu0 0.0
  %682 = vmatpush1.msra.mxu0 0.0
  %683 = vmatprep.subr.mxu0 0.0
  %684 = vmatpush1.msra.mxu0 0.0
  %685 = vmatprep.subr.mxu0 0.0
  %686 = vmatpush1.msra.mxu0 0.0
  %687 = vmatprep.subr.mxu0 0.0
  %688 = vmatpush1.msra.mxu0 0.0
  %689 = vmatprep.subr.mxu0 0.0
  %690 = vmatpush1.msra.mxu0 0.0
  %691 = vmatprep.subr.mxu0 0.0
  %692 = vmatpush1.msra.mxu0 0.0
  %693 = vmatprep.subr.mxu0 0.0
  %694 = vmatpush1.msra.mxu0 0.0
  %695 = vmatprep.subr.mxu0 0.0
  %696 = vmatpush1.msra.mxu0 0.0
  %697 = vmatprep.subr.mxu0 0.0
  %698 = vmatpush1.msra.mxu0 0.0
  %699 = vmatprep.subr.mxu0 0.0
  %700 = vmatpush1.msra.mxu0 0.0
  %701 = vmatprep.subr.mxu0 0.0
  %702 = vmatpush1.msra.mxu0 0.0
  %703 = vmatprep.subr.mxu0 0.0
  %704 = vmatpush1.msra.mxu0 0.0
  %705 = vmatprep.subr.mxu0 0.0
  %706 = vmatpush1.msra.mxu0 0.0
  %707 = vmatprep.subr.mxu0 0.0
  %708 = vmatpush1.msra.mxu0 0.0
  %709 = vmatprep.subr.mxu0 0.0
  %710 = vmatpush1.msra.mxu0 0.0
  %711 = vmatprep.subr.mxu0 0.0
  %712 = vmatpush1.msra.mxu0 0.0
  %713 = vmatprep.subr.mxu0 0.0
  %714 = vmatpush1.msra.mxu0 0.0
  %715 = vmatprep.subr.mxu0 0.0
  %716 = vmatpush1.msra.mxu0 0.0
  %717 = vmatprep.subr.mxu0 0.0
  %718 = vmatpush1.msra.mxu0 0.0
  %719 = vmatprep.subr.mxu0 0.0
  %720 = vmatpush1.msra.mxu0 0.0
  %721 = vmatprep.subr.mxu0 0.0
  %722 = vmatpush1.msra.mxu0 0.0
  %723 = vmatprep.subr.mxu0 0.0
  %724 = vmatpush1.msra.mxu0 0.0
  %725 = vmatprep.subr.mxu0 0.0
  %726 = vmatpush1.msra.mxu0 0.0
  %727 = vmatprep.subr.mxu0 0.0
  %728 = vmatpush1.msra.mxu0 0.0
  %729 = vmatprep.subr.mxu0 0.0
  %730 = vmatpush1.msra.mxu0 0.0
  %731 = vmatprep.subr.mxu0 0.0
  %732 = vmatpush1.msra.mxu0 0.0
  %733 = vmatprep.subr.mxu0 0.0
  %734 = vmatpush1.msra.mxu0 0.0
  %735 = vmatprep.subr.mxu0 0.0
  %736 = vmatpush1.msra.mxu0 0.0
  %737 = vmatprep.subr.mxu0 0.0
  %738 = vmatpush1.msra.mxu0 0.0
  %739 = vmatprep.mubr.f32.mxu0 0.0
  %740 = vmatmul.mubr.f32.gmra.mrb[0].mxu0 %v30
  %v741 = vpop.f32.mrb[0].mxu0
  %v742 = vadd.f32 0.0, %v741
  %v743 = vpop.f32.mrb[0].mxu0
  %744 = vmatprep.mubr.f32.mxu0 0.0
  %745 = vmatmul.mubr.f32.gmra.mrb[0].mxu0 %v33
  %v746 = vpop.f32.mrb[0].mxu0
  %v747 = vadd.f32 0.0, %v746
  %v748 = vpop.f32.mrb[0].mxu0
  %749 = vmatprep.mubr.f32.mxu0 0.0
  %750 = vmatmul.mubr.f32.gmra.mrb[0].mxu0 %v36
  %v751 = vpop.f32.mrb[0].mxu0
  %v752 = vadd.f32 0.0, %v751
  %v753 = vpop.f32.mrb[0].mxu0
  %754 = vmatprep.mubr.f32.mxu0 0.0
  %755 = vmatmul.mubr.f32.gmra.mrb[0].mxu0 %v39
  %v756 = vpop.f32.mrb[0].mxu0
  %v757 = vadd.f32 0.0, %v756
  %v758 = vpop.f32.mrb[0].mxu0
  %759 = vmatprep.mubr.f32.mxu0 0.0
  %760 = vmatmul.mubr.f32.gmra.mrb[0].mxu0 %v42
  %v761 = vpop.f32.mrb[0].mxu0
  %v762 = vadd.f32 0.0, %v761
  %v763 = vpop.f32.mrb[0].mxu0
  %764 = vmatprep.mubr.f32.mxu0 0.0
  %765 = vmatmul.mubr.f32.gmra.mrb[0].mxu0 %v45
  %v766 = vpop.f32.mrb[0].mxu0
  %v767 = vadd.f32 0.0, %v766
  %v768 = vpop.f32.mrb[0].mxu0
  %769 = vmatprep.mubr.f32.mxu0 0.0
  %770 = vmatmul.mubr.f32.gmra.mrb[0].mxu0 %v48
  %v771 = vpop.f32.mrb[0].mxu0
  %v772 = vadd.f32 0.0, %v771
  %v773 = vpop.f32.mrb[0].mxu0
  %774 = vmatprep.mubr.f32.mxu0 0.0
  %775 = vmatmul.mubr.f32.gmra.mrb[0].mxu0 %v51
  %v776 = vpop.f32.mrb[0].mxu0
  %v777 = vadd.f32 0.0, %v776
  %v778 = vpop.f32.mrb[0].mxu0
  %779 = vmatprep.mubr.f32.mxu0 0.0
  %780 = vmatmul.mubr.f32.gmra.mrb[0].mxu0 %v54
  %v781 = vpop.f32.mrb[0].mxu0
  %v782 = vadd.f32 0.0, %v781
  %v783 = vpop.f32.mrb[0].mxu0
  %784 = vmatprep.mubr.f32.mxu0 0.0
  %785 = vmatmul.mubr.f32.gmra.mrb[0].mxu0 %v57
  %v786 = vpop.f32.mrb[0].mxu0
  %v787 = vadd.f32 0.0, %v786
  %v788 = vpop.f32.mrb[0].mxu0
  %789 = vmatprep.mubr.f32.mxu0 0.0
  %790 = vmatmul.mubr.f32.gmra.mrb[0].mxu0 %v60
  %v791 = vpop.f32.mrb[0].mxu0
  %v792 = vadd.f32 0.0, %v791
  %v793 = vpop.f32.mrb[0].mxu0
  %794 = vmatprep.mubr.f32.mxu0 0.0
  %795 = vmatmul.mubr.f32.gmra.mrb[0].mxu0 %v63
  %v796 = vpop.f32.mrb[0].mxu0
  %v797 = vadd.f32 0.0, %v796
  %v798 = vpop.f32.mrb[0].mxu0
  %799 = vmatprep.mubr.f32.mxu0 0.0
  %800 = vmatmul.mubr.f32.gmra.mrb[0].mxu0 %v66
  %v801 = vpop.f32.mrb[0].mxu0
  %v802 = vadd.f32 0.0, %v801
  %v803 = vpop.f32.mrb[0].mxu0
  %804 = vmatprep.mubr.f32.mxu0 0.0
  %805 = vmatmul.mubr.f32.gmra.mrb[0].mxu0 %v69
  %v806 = vpop.f32.mrb[0].mxu0
  %v807 = vadd.f32 0.0, %v806
  %v808 = vpop.f32.mrb[0].mxu0
  %809 = vdwg.mxu0
  %v810 = vmax.f32 %v656, %v742
  %v811 = vmax.f32 %v657, %v747
  %v812 = vmax.f32 %v658, %v752
  %v813 = vmax.f32 %v659, %v757
  %v814 = vmax.f32 %v660, %v762
  %v815 = vmax.f32 %v661, %v767
  %v816 = vmax.f32 %v662, %v772
  %v817 = vmax.f32 %v663, %v777
  %v818 = vmax.f32 %v664, %v782
  %v819 = vmax.f32 %v665, %v787
  %v820 = vmax.f32 %v666, %v792
  %v821 = vmax.f32 %v667, %v797
  %v822 = vmax.f32 %v668, %v802
  %v823 = vmax.f32 %v669, %v807
  %vm824 = vcmask 1042432
  %v825 = vrot.slane %v11, 5
  %v826 = vrot.slane %v12, 5
  %v827 = vsel %vm824, %v825, %v826
  %829 = vmatprep.subr.mxu0 0.0
  %830 = vmatpush1.msra.mxu0 %v827
  %831 = vmatprep.subr.mxu0 0.0
  %832 = vmatpush1.msra.mxu0 0.0
  %833 = vmatprep.subr.mxu0 0.0
  %834 = vmatpush1.msra.mxu0 0.0
  %835 = vmatprep.subr.mxu0 0.0
  %836 = vmatpush1.msra.mxu0 0.0
  %837 = vmatprep.subr.mxu0 0.0
  %838 = vmatpush1.msra.mxu0 0.0
  %839 = vmatprep.subr.mxu0 0.0
  %840 = vmatpush1.msra.mxu0 0.0
  %841 = vmatprep.subr.mxu0 0.0
  %842 = vmatpush1.msra.mxu0 0.0
  %843 = vmatprep.subr.mxu0 0.0
  %844 = vmatpush1.msra.mxu0 0.0
  %845 = vmatprep.subr.mxu0 0.0
  %846 = vmatpush1.msra.mxu0 0.0
  %847 = vmatprep.subr.mxu0 0.0
  %848 = vmatpush1.msra.mxu0 0.0
  %849 = vmatprep.subr.mxu0 0.0
  %850 = vmatpush1.msra.mxu0 0.0
  %851 = vmatprep.subr.mxu0 0.0
  %852 = vmatpush1.msra.mxu0 0.0
  %853 = vmatprep.subr.mxu0 0.0
  %854 = vmatpush1.msra.mxu0 0.0
  %855 = vmatprep.subr.mxu0 0.0
  %856 = vmatpush1.msra.mxu0 0.0
  %857 = vmatprep.subr.mxu0 0.0
  %858 = vmatpush1.msra.mxu0 0.0
  %859 = vmatprep.subr.mxu0 0.0
  %860 = vmatpush1.msra.mxu0 0.0
  %861 = vmatprep.subr.mxu0 0.0
  %862 = vmatpush1.msra.mxu0 0.0
  %863 = vmatprep.subr.mxu0 0.0
  %864 = vmatpush1.msra.mxu0 0.0
  %865 = vmatprep.subr.mxu0 0.0
  %866 = vmatpush1.msra.mxu0 0.0
  %867 = vmatprep.subr.mxu0 0.0
  %868 = vmatpush1.msra.mxu0 0.0
  %869 = vmatprep.subr.mxu0 0.0
  %870 = vmatpush1.msra.mxu0 0.0
  %871 = vmatprep.subr.mxu0 0.0
  %872 = vmatpush1.msra.mxu0 0.0
  %873 = vmatprep.subr.mxu0 0.0
  %874 = vmatpush1.msra.mxu0 0.0
  %875 = vmatprep.subr.mxu0 0.0
  %876 = vmatpush1.msra.mxu0 0.0
  %877 = vmatprep.subr.mxu0 0.0
  %878 = vmatpush1.msra.mxu0 0.0
  %879 = vmatprep.subr.mxu0 0.0
  %880 = vmatpush1.msra.mxu0 0.0
  %881 = vmatprep.subr.mxu0 0.0
  %882 = vmatpush1.msra.mxu0 0.0
  %883 = vmatprep.subr.mxu0 0.0
  %884 = vmatpush1.msra.mxu0 0.0
  %885 = vmatprep.subr.mxu0 0.0
  %886 = vmatpush1.msra.mxu0 0.0
  %887 = vmatprep.subr.mxu0 0.0
  %888 = vmatpush1.msra.mxu0 0.0
  %889 = vmatprep.subr.mxu0 0.0
  %890 = vmatpush1.msra.mxu0 0.0
  %891 = vmatprep.subr.mxu0 0.0
  %892 = vmatpush1.msra.mxu0 0.0
  %893 = vmatprep.mubr.f32.mxu0 0.0
  %894 = vmatmul.mubr.f32.gmra.mrb[0].mxu0 %v30
  %v895 = vpop.f32.mrb[0].mxu0
  %v896 = vadd.f32 0.0, %v895
  %v897 = vpop.f32.mrb[0].mxu0
  %898 = vmatprep.mubr.f32.mxu0 0.0
  %899 = vmatmul.mubr.f32.gmra.mrb[0].mxu0 %v33
  %v900 = vpop.f32.mrb[0].mxu0
  %v901 = vadd.f32 0.0, %v900
  %v902 = vpop.f32.mrb[0].mxu0
  %903 = vmatprep.mubr.f32.mxu0 0.0
  %904 = vmatmul.mubr.f32.gmra.mrb[0].mxu0 %v36
  %v905 = vpop.f32.mrb[0].mxu0
  %v906 = vadd.f32 0.0, %v905
  %v907 = vpop.f32.mrb[0].mxu0
  %908 = vmatprep.mubr.f32.mxu0 0.0
  %909 = vmatmul.mubr.f32.gmra.mrb[0].mxu0 %v39
  %v910 = vpop.f32.mrb[0].mxu0
  %v911 = vadd.f32 0.0, %v910
  %v912 = vpop.f32.mrb[0].mxu0
  %913 = vmatprep.mubr.f32.mxu0 0.0
  %914 = vmatmul.mubr.f32.gmra.mrb[0].mxu0 %v42
  %v915 = vpop.f32.mrb[0].mxu0
  %v916 = vadd.f32 0.0, %v915
  %v917 = vpop.f32.mrb[0].mxu0
  %918 = vmatprep.mubr.f32.mxu0 0.0
  %919 = vmatmul.mubr.f32.gmra.mrb[0].mxu0 %v45
  %v920 = vpop.f32.mrb[0].mxu0
  %v921 = vadd.f32 0.0, %v920
  %v922 = vpop.f32.mrb[0].mxu0
  %923 = vmatprep.mubr.f32.mxu0 0.0
  %924 = vmatmul.mubr.f32.gmra.mrb[0].mxu0 %v48
  %v925 = vpop.f32.mrb[0].mxu0
  %v926 = vadd.f32 0.0, %v925
  %v927 = vpop.f32.mrb[0].mxu0
  %928 = vmatprep.mubr.f32.mxu0 0.0
  %929 = vmatmul.mubr.f32.gmra.mrb[0].mxu0 %v51
  %v930 = vpop.f32.mrb[0].mxu0
  %v931 = vadd.f32 0.0, %v930
  %v932 = vpop.f32.mrb[0].mxu0
  %933 = vmatprep.mubr.f32.mxu0 0.0
  %934 = vmatmul.mubr.f32.gmra.mrb[0].mxu0 %v54
  %v935 = vpop.f32.mrb[0].mxu0
  %v936 = vadd.f32 0.0, %v935
  %v937 = vpop.f32.mrb[0].mxu0
  %938 = vmatprep.mubr.f32.mxu0 0.0
  %939 = vmatmul.mubr.f32.gmra.mrb[0].mxu0 %v57
  %v940 = vpop.f32.mrb[0].mxu0
  %v941 = vadd.f32 0.0, %v940
  %v942 = vpop.f32.mrb[0].mxu0
  %943 = vmatprep.mubr.f32.mxu0 0.0
  %944 = vmatmul.mubr.f32.gmra.mrb[0].mxu0 %v60
  %v945 = vpop.f32.mrb[0].mxu0
  %v946 = vadd.f32 0.0, %v945
  %v947 = vpop.f32.mrb[0].mxu0
  %948 = vmatprep.mubr.f32.mxu0 0.0
  %949 = vmatmul.mubr.f32.gmra.mrb[0].mxu0 %v63
  %v950 = vpop.f32.mrb[0].mxu0
  %v951 = vadd.f32 0.0, %v950
  %v952 = vpop.f32.mrb[0].mxu0
  %953 = vmatprep.mubr.f32.mxu0 0.0
  %954 = vmatmul.mubr.f32.gmra.mrb[0].mxu0 %v66
  %v955 = vpop.f32.mrb[0].mxu0
  %v956 = vadd.f32 0.0, %v955
  %v957 = vpop.f32.mrb[0].mxu0
  %958 = vmatprep.mubr.f32.mxu0 0.0
  %959 = vmatmul.mubr.f32.gmra.mrb[0].mxu0 %v69
  %v960 = vpop.f32.mrb[0].mxu0
  %v961 = vadd.f32 0.0, %v960
  %v962 = vpop.f32.mrb[0].mxu0
  %963 = vdwg.mxu0
  %v964 = vmax.f32 %v810, %v896
  %v965 = vmax.f32 %v811, %v901
  %v966 = vmax.f32 %v812, %v906
  %v967 = vmax.f32 %v813, %v911
  %v968 = vmax.f32 %v814, %v916
  %v969 = vmax.f32 %v815, %v921
  %v970 = vmax.f32 %v816, %v926
  %v971 = vmax.f32 %v817, %v931
  %v972 = vmax.f32 %v818, %v936
  %v973 = vmax.f32 %v819, %v941
  %v974 = vmax.f32 %v820, %v946
  %v975 = vmax.f32 %v821, %v951
  %v976 = vmax.f32 %v822, %v956
  %v977 = vmax.f32 %v823, %v961
  %vm978 = vcmask 1041408
  %v979 = vrot.slane %v11, 6
  %v980 = vrot.slane %v12, 6
  %v981 = vsel %vm978, %v979, %v980
  %983 = vmatprep.subr.mxu0 0.0
  %984 = vmatpush1.msra.mxu0 %v981
  %985 = vmatprep.subr.mxu0 0.0
  %986 = vmatpush1.msra.mxu0 0.0
  %987 = vmatprep.subr.mxu0 0.0
  %988 = vmatpush1.msra.mxu0 0.0
  %989 = vmatprep.subr.mxu0 0.0
  %990 = vmatpush1.msra.mxu0 0.0
  %991 = vmatprep.subr.mxu0 0.0
  %992 = vmatpush1.msra.mxu0 0.0
  %993 = vmatprep.subr.mxu0 0.0
  %994 = vmatpush1.msra.mxu0 0.0
  %995 = vmatprep.subr.mxu0 0.0
  %996 = vmatpush1.msra.mxu0 0.0
  %997 = vmatprep.subr.mxu0 0.0
  %998 = vmatpush1.msra.mxu0 0.0
  %999 = vmatprep.subr.mxu0 0.0
  %1000 = vmatpush1.msra.mxu0 0.0
  %1001 = vmatprep.subr.mxu0 0.0
  %1002 = vmatpush1.msra.mxu0 0.0
  %1003 = vmatprep.subr.mxu0 0.0
  %1004 = vmatpush1.msra.mxu0 0.0
  %1005 = vmatprep.subr.mxu0 0.0
  %1006 = vmatpush1.msra.mxu0 0.0
  %1007 = vmatprep.subr.mxu0 0.0
  %1008 = vmatpush1.msra.mxu0 0.0
  %1009 = vmatprep.subr.mxu0 0.0
  %1010 = vmatpush1.msra.mxu0 0.0
  %1011 = vmatprep.subr.mxu0 0.0
  %1012 = vmatpush1.msra.mxu0 0.0
  %1013 = vmatprep.subr.mxu0 0.0
  %1014 = vmatpush1.msra.mxu0 0.0
  %1015 = vmatprep.subr.mxu0 0.0
  %1016 = vmatpush1.msra.mxu0 0.0
  %1017 = vmatprep.subr.mxu0 0.0
  %1018 = vmatpush1.msra.mxu0 0.0
  %1019 = vmatprep.subr.mxu0 0.0
  %1020 = vmatpush1.msra.mxu0 0.0
  %1021 = vmatprep.subr.mxu0 0.0
  %1022 = vmatpush1.msra.mxu0 0.0
  %1023 = vmatprep.subr.mxu0 0.0
  %1024 = vmatpush1.msra.mxu0 0.0
  %1025 = vmatprep.subr.mxu0 0.0
  %1026 = vmatpush1.msra.mxu0 0.0
  %1027 = vmatprep.subr.mxu0 0.0
  %1028 = vmatpush1.msra.mxu0 0.0
  %1029 = vmatprep.subr.mxu0 0.0
  %1030 = vmatpush1.msra.mxu0 0.0
  %1031 = vmatprep.subr.mxu0 0.0
  %1032 = vmatpush1.msra.mxu0 0.0
  %1033 = vmatprep.subr.mxu0 0.0
  %1034 = vmatpush1.msra.mxu0 0.0
  %1035 = vmatprep.subr.mxu0 0.0
  %1036 = vmatpush1.msra.mxu0 0.0
  %1037 = vmatprep.subr.mxu0 0.0
  %1038 = vmatpush1.msra.mxu0 0.0
  %1039 = vmatprep.subr.mxu0 0.0
  %1040 = vmatpush1.msra.mxu0 0.0
  %1041 = vmatprep.subr.mxu0 0.0
  %1042 = vmatpush1.msra.mxu0 0.0
  %1043 = vmatprep.subr.mxu0 0.0
  %1044 = vmatpush1.msra.mxu0 0.0
  %1045 = vmatprep.subr.mxu0 0.0
  %1046 = vmatpush1.msra.mxu0 0.0
  %1047 = vmatprep.mubr.f32.mxu0 0.0
  %1048 = vmatmul.mubr.f32.gmra.mrb[0].mxu0 %v30
  %v1049 = vpop.f32.mrb[0].mxu0
  %v1050 = vadd.f32 0.0, %v1049
  %v1051 = vpop.f32.mrb[0].mxu0
  %1052 = vmatprep.mubr.f32.mxu0 0.0
  %1053 = vmatmul.mubr.f32.gmra.mrb[0].mxu0 %v33
  %v1054 = vpop.f32.mrb[0].mxu0
  %v1055 = vadd.f32 0.0, %v1054
  %v1056 = vpop.f32.mrb[0].mxu0
  %1057 = vmatprep.mubr.f32.mxu0 0.0
  %1058 = vmatmul.mubr.f32.gmra.mrb[0].mxu0 %v36
  %v1059 = vpop.f32.mrb[0].mxu0
  %v1060 = vadd.f32 0.0, %v1059
  %v1061 = vpop.f32.mrb[0].mxu0
  %1062 = vmatprep.mubr.f32.mxu0 0.0
  %1063 = vmatmul.mubr.f32.gmra.mrb[0].mxu0 %v39
  %v1064 = vpop.f32.mrb[0].mxu0
  %v1065 = vadd.f32 0.0, %v1064
  %v1066 = vpop.f32.mrb[0].mxu0
  %1067 = vmatprep.mubr.f32.mxu0 0.0
  %1068 = vmatmul.mubr.f32.gmra.mrb[0].mxu0 %v42
  %v1069 = vpop.f32.mrb[0].mxu0
  %v1070 = vadd.f32 0.0, %v1069
  %v1071 = vpop.f32.mrb[0].mxu0
  %1072 = vmatprep.mubr.f32.mxu0 0.0
  %1073 = vmatmul.mubr.f32.gmra.mrb[0].mxu0 %v45
  %v1074 = vpop.f32.mrb[0].mxu0
  %v1075 = vadd.f32 0.0, %v1074
  %v1076 = vpop.f32.mrb[0].mxu0
  %1077 = vmatprep.mubr.f32.mxu0 0.0
  %1078 = vmatmul.mubr.f32.gmra.mrb[0].mxu0 %v48
  %v1079 = vpop.f32.mrb[0].mxu0
  %v1080 = vadd.f32 0.0, %v1079
  %v1081 = vpop.f32.mrb[0].mxu0
  %1082 = vmatprep.mubr.f32.mxu0 0.0
  %1083 = vmatmul.mubr.f32.gmra.mrb[0].mxu0 %v51
  %v1084 = vpop.f32.mrb[0].mxu0
  %v1085 = vadd.f32 0.0, %v1084
  %v1086 = vpop.f32.mrb[0].mxu0
  %1087 = vmatprep.mubr.f32.mxu0 0.0
  %1088 = vmatmul.mubr.f32.gmra.mrb[0].mxu0 %v54
  %v1089 = vpop.f32.mrb[0].mxu0
  %v1090 = vadd.f32 0.0, %v1089
  %v1091 = vpop.f32.mrb[0].mxu0
  %1092 = vmatprep.mubr.f32.mxu0 0.0
  %1093 = vmatmul.mubr.f32.gmra.mrb[0].mxu0 %v57
  %v1094 = vpop.f32.mrb[0].mxu0
  %v1095 = vadd.f32 0.0, %v1094
  %v1096 = vpop.f32.mrb[0].mxu0
  %1097 = vmatprep.mubr.f32.mxu0 0.0
  %1098 = vmatmul.mubr.f32.gmra.mrb[0].mxu0 %v60
  %v1099 = vpop.f32.mrb[0].mxu0
  %v1100 = vadd.f32 0.0, %v1099
  %v1101 = vpop.f32.mrb[0].mxu0
  %1102 = vmatprep.mubr.f32.mxu0 0.0
  %1103 = vmatmul.mubr.f32.gmra.mrb[0].mxu0 %v63
  %v1104 = vpop.f32.mrb[0].mxu0
  %v1105 = vadd.f32 0.0, %v1104
  %v1106 = vpop.f32.mrb[0].mxu0
  %1107 = vmatprep.mubr.f32.mxu0 0.0
  %1108 = vmatmul.mubr.f32.gmra.mrb[0].mxu0 %v66
  %v1109 = vpop.f32.mrb[0].mxu0
  %v1110 = vadd.f32 0.0, %v1109
  %v1111 = vpop.f32.mrb[0].mxu0
  %1112 = vmatprep.mubr.f32.mxu0 0.0
  %1113 = vmatmul.mubr.f32.gmra.mrb[0].mxu0 %v69
  %v1114 = vpop.f32.mrb[0].mxu0
  %v1115 = vadd.f32 0.0, %v1114
  %v1116 = vpop.f32.mrb[0].mxu0
  %1117 = vdwg.mxu0
  %v1118 = vmax.f32 %v964, %v1050
  %v1119 = vmax.f32 %v965, %v1055
  %v1120 = vmax.f32 %v966, %v1060
  %v1121 = vmax.f32 %v967, %v1065
  %v1122 = vmax.f32 %v968, %v1070
  %v1123 = vmax.f32 %v969, %v1075
  %v1124 = vmax.f32 %v970, %v1080
  %v1125 = vmax.f32 %v971, %v1085
  %v1126 = vmax.f32 %v972, %v1090
  %v1127 = vmax.f32 %v973, %v1095
  %v1128 = vmax.f32 %v974, %v1100
  %v1129 = vmax.f32 %v975, %v1105
  %v1130 = vmax.f32 %v976, %v1110
  %v1131 = vmax.f32 %v977, %v1115
  %vm1132 = vcmask 1040384
  %v1133 = vrot.slane %v11, 7
  %v1134 = vrot.slane %v12, 7
  %v1135 = vsel %vm1132, %v1133, %v1134
  %1137 = vmatprep.subr.mxu0 0.0
  %1138 = vmatpush1.msra.mxu0 %v1135
  %1139 = vmatprep.subr.mxu0 0.0
  %1140 = vmatpush1.msra.mxu0 0.0
  %1141 = vmatprep.subr.mxu0 0.0
  %1142 = vmatpush1.msra.mxu0 0.0
  %1143 = vmatprep.subr.mxu0 0.0
  %1144 = vmatpush1.msra.mxu0 0.0
  %1145 = vmatprep.subr.mxu0 0.0
  %1146 = vmatpush1.msra.mxu0 0.0
  %1147 = vmatprep.subr.mxu0 0.0
  %1148 = vmatpush1.msra.mxu0 0.0
  %1149 = vmatprep.subr.mxu0 0.0
  %1150 = vmatpush1.msra.mxu0 0.0
  %1151 = vmatprep.subr.mxu0 0.0
  %1152 = vmatpush1.msra.mxu0 0.0
  %1153 = vmatprep.subr.mxu0 0.0
  %1154 = vmatpush1.msra.mxu0 0.0
  %1155 = vmatprep.subr.mxu0 0.0
  %1156 = vmatpush1.msra.mxu0 0.0
  %1157 = vmatprep.subr.mxu0 0.0
  %1158 = vmatpush1.msra.mxu0 0.0
  %1159 = vmatprep.subr.mxu0 0.0
  %1160 = vmatpush1.msra.mxu0 0.0
  %1161 = vmatprep.subr.mxu0 0.0
  %1162 = vmatpush1.msra.mxu0 0.0
  %1163 = vmatprep.subr.mxu0 0.0
  %1164 = vmatpush1.msra.mxu0 0.0
  %1165 = vmatprep.subr.mxu0 0.0
  %1166 = vmatpush1.msra.mxu0 0.0
  %1167 = vmatprep.subr.mxu0 0.0
  %1168 = vmatpush1.msra.mxu0 0.0
  %1169 = vmatprep.subr.mxu0 0.0
  %1170 = vmatpush1.msra.mxu0 0.0
  %1171 = vmatprep.subr.mxu0 0.0
  %1172 = vmatpush1.msra.mxu0 0.0
  %1173 = vmatprep.subr.mxu0 0.0
  %1174 = vmatpush1.msra.mxu0 0.0
  %1175 = vmatprep.subr.mxu0 0.0
  %1176 = vmatpush1.msra.mxu0 0.0
  %1177 = vmatprep.subr.mxu0 0.0
  %1178 = vmatpush1.msra.mxu0 0.0
  %1179 = vmatprep.subr.mxu0 0.0
  %1180 = vmatpush1.msra.mxu0 0.0
  %1181 = vmatprep.subr.mxu0 0.0
  %1182 = vmatpush1.msra.mxu0 0.0
  %1183 = vmatprep.subr.mxu0 0.0
  %1184 = vmatpush1.msra.mxu0 0.0
  %1185 = vmatprep.subr.mxu0 0.0
  %1186 = vmatpush1.msra.mxu0 0.0
  %1187 = vmatprep.subr.mxu0 0.0
  %1188 = vmatpush1.msra.mxu0 0.0
  %1189 = vmatprep.subr.mxu0 0.0
  %1190 = vmatpush1.msra.mxu0 0.0
  %1191 = vmatprep.subr.mxu0 0.0
  %1192 = vmatpush1.msra.mxu0 0.0
  %1193 = vmatprep.subr.mxu0 0.0
  %1194 = vmatpush1.msra.mxu0 0.0
  %1195 = vmatprep.subr.mxu0 0.0
  %1196 = vmatpush1.msra.mxu0 0.0
  %1197 = vmatprep.subr.mxu0 0.0
  %1198 = vmatpush1.msra.mxu0 0.0
  %1199 = vmatprep.subr.mxu0 0.0
  %1200 = vmatpush1.msra.mxu0 0.0
  %1201 = vmatprep.mubr.f32.mxu0 0.0
  %1202 = vmatmul.mubr.f32.gmra.mrb[0].mxu0 %v30
  %v1203 = vpop.f32.mrb[0].mxu0
  %v1204 = vadd.f32 0.0, %v1203
  %v1205 = vpop.f32.mrb[0].mxu0
  %1206 = vmatprep.mubr.f32.mxu0 0.0
  %1207 = vmatmul.mubr.f32.gmra.mrb[0].mxu0 %v33
  %v1208 = vpop.f32.mrb[0].mxu0
  %v1209 = vadd.f32 0.0, %v1208
  %v1210 = vpop.f32.mrb[0].mxu0
  %1211 = vmatprep.mubr.f32.mxu0 0.0
  %1212 = vmatmul.mubr.f32.gmra.mrb[0].mxu0 %v36
  %v1213 = vpop.f32.mrb[0].mxu0
  %v1214 = vadd.f32 0.0, %v1213
  %v1215 = vpop.f32.mrb[0].mxu0
  %1216 = vmatprep.mubr.f32.mxu0 0.0
  %1217 = vmatmul.mubr.f32.gmra.mrb[0].mxu0 %v39
  %v1218 = vpop.f32.mrb[0].mxu0
  %v1219 = vadd.f32 0.0, %v1218
  %v1220 = vpop.f32.mrb[0].mxu0
  %1221 = vmatprep.mubr.f32.mxu0 0.0
  %1222 = vmatmul.mubr.f32.gmra.mrb[0].mxu0 %v42
  %v1223 = vpop.f32.mrb[0].mxu0
  %v1224 = vadd.f32 0.0, %v1223
  %v1225 = vpop.f32.mrb[0].mxu0
  %1226 = vmatprep.mubr.f32.mxu0 0.0
  %1227 = vmatmul.mubr.f32.gmra.mrb[0].mxu0 %v45
  %v1228 = vpop.f32.mrb[0].mxu0
  %v1229 = vadd.f32 0.0, %v1228
  %v1230 = vpop.f32.mrb[0].mxu0
  %1231 = vmatprep.mubr.f32.mxu0 0.0
  %1232 = vmatmul.mubr.f32.gmra.mrb[0].mxu0 %v48
  %v1233 = vpop.f32.mrb[0].mxu0
  %v1234 = vadd.f32 0.0, %v1233
  %v1235 = vpop.f32.mrb[0].mxu0
  %1236 = vmatprep.mubr.f32.mxu0 0.0
  %1237 = vmatmul.mubr.f32.gmra.mrb[0].mxu0 %v51
  %v1238 = vpop.f32.mrb[0].mxu0
  %v1239 = vadd.f32 0.0, %v1238
  %v1240 = vpop.f32.mrb[0].mxu0
  %1241 = vmatprep.mubr.f32.mxu0 0.0
  %1242 = vmatmul.mubr.f32.gmra.mrb[0].mxu0 %v54
  %v1243 = vpop.f32.mrb[0].mxu0
  %v1244 = vadd.f32 0.0, %v1243
  %v1245 = vpop.f32.mrb[0].mxu0
  %1246 = vmatprep.mubr.f32.mxu0 0.0
  %1247 = vmatmul.mubr.f32.gmra.mrb[0].mxu0 %v57
  %v1248 = vpop.f32.mrb[0].mxu0
  %v1249 = vadd.f32 0.0, %v1248
  %v1250 = vpop.f32.mrb[0].mxu0
  %1251 = vmatprep.mubr.f32.mxu0 0.0
  %1252 = vmatmul.mubr.f32.gmra.mrb[0].mxu0 %v60
  %v1253 = vpop.f32.mrb[0].mxu0
  %v1254 = vadd.f32 0.0, %v1253
  %v1255 = vpop.f32.mrb[0].mxu0
  %1256 = vmatprep.mubr.f32.mxu0 0.0
  %1257 = vmatmul.mubr.f32.gmra.mrb[0].mxu0 %v63
  %v1258 = vpop.f32.mrb[0].mxu0
  %v1259 = vadd.f32 0.0, %v1258
  %v1260 = vpop.f32.mrb[0].mxu0
  %1261 = vmatprep.mubr.f32.mxu0 0.0
  %1262 = vmatmul.mubr.f32.gmra.mrb[0].mxu0 %v66
  %v1263 = vpop.f32.mrb[0].mxu0
  %v1264 = vadd.f32 0.0, %v1263
  %v1265 = vpop.f32.mrb[0].mxu0
  %1266 = vmatprep.mubr.f32.mxu0 0.0
  %1267 = vmatmul.mubr.f32.gmra.mrb[0].mxu0 %v69
  %v1268 = vpop.f32.mrb[0].mxu0
  %v1269 = vadd.f32 0.0, %v1268
  %v1270 = vpop.f32.mrb[0].mxu0
  %1271 = vdwg.mxu0
  %v1272 = vmax.f32 %v1118, %v1204
  %v1273 = vmax.f32 %v1119, %v1209
  %v1274 = vmax.f32 %v1120, %v1214
  %v1275 = vmax.f32 %v1121, %v1219
  %v1276 = vmax.f32 %v1122, %v1224
  %v1277 = vmax.f32 %v1123, %v1229
  %v1278 = vmax.f32 %v1124, %v1234
  %v1279 = vmax.f32 %v1125, %v1239
  %v1280 = vmax.f32 %v1126, %v1244
  %v1281 = vmax.f32 %v1127, %v1249
  %v1282 = vmax.f32 %v1128, %v1254
  %v1283 = vmax.f32 %v1129, %v1259
  %v1284 = vmax.f32 %v1130, %v1264
  %v1285 = vmax.f32 %v1131, %v1269
  %1286 = vmatprep.subr.mxu0 0.0
  %1287 = vmatpush1.msra.mxu0 %v12
  %1288 = vmatprep.subr.mxu0 0.0
  %1289 = vmatpush1.msra.mxu0 0.0
  %1290 = vmatprep.subr.mxu0 0.0
  %1291 = vmatpush1.msra.mxu0 0.0
  %1292 = vmatprep.subr.mxu0 0.0
  %1293 = vmatpush1.msra.mxu0 0.0
  %1294 = vmatprep.subr.mxu0 0.0
  %1295 = vmatpush1.msra.mxu0 0.0
  %1296 = vmatprep.subr.mxu0 0.0
  %1297 = vmatpush1.msra.mxu0 0.0
  %1298 = vmatprep.subr.mxu0 0.0
  %1299 = vmatpush1.msra.mxu0 0.0
  %1300 = vmatprep.subr.mxu0 0.0
  %1301 = vmatpush1.msra.mxu0 0.0
  %1302 = vmatprep.subr.mxu0 0.0
  %1303 = vmatpush1.msra.mxu0 0.0
  %1304 = vmatprep.subr.mxu0 0.0
  %1305 = vmatpush1.msra.mxu0 0.0
  %1306 = vmatprep.subr.mxu0 0.0
  %1307 = vmatpush1.msra.mxu0 0.0
  %1308 = vmatprep.subr.mxu0 0.0
  %1309 = vmatpush1.msra.mxu0 0.0
  %1310 = vmatprep.subr.mxu0 0.0
  %1311 = vmatpush1.msra.mxu0 0.0
  %1312 = vmatprep.subr.mxu0 0.0
  %1313 = vmatpush1.msra.mxu0 0.0
  %1314 = vmatprep.subr.mxu0 0.0
  %1315 = vmatpush1.msra.mxu0 0.0
  %1316 = vmatprep.subr.mxu0 0.0
  %1317 = vmatpush1.msra.mxu0 0.0
  %1318 = vmatprep.subr.mxu0 0.0
  %1319 = vmatpush1.msra.mxu0 0.0
  %1320 = vmatprep.subr.mxu0 0.0
  %1321 = vmatpush1.msra.mxu0 0.0
  %1322 = vmatprep.subr.mxu0 0.0
  %1323 = vmatpush1.msra.mxu0 0.0
  %1324 = vmatprep.subr.mxu0 0.0
  %1325 = vmatpush1.msra.mxu0 0.0
  %1326 = vmatprep.subr.mxu0 0.0
  %1327 = vmatpush1.msra.mxu0 0.0
  %1328 = vmatprep.subr.mxu0 0.0
  %1329 = vmatpush1.msra.mxu0 0.0
  %1330 = vmatprep.subr.mxu0 0.0
  %1331 = vmatpush1.msra.mxu0 0.0
  %1332 = vmatprep.subr.mxu0 0.0
  %1333 = vmatpush1.msra.mxu0 0.0
  %1334 = vmatprep.subr.mxu0 0.0
  %1335 = vmatpush1.msra.mxu0 0.0
  %1336 = vmatprep.subr.mxu0 0.0
  %1337 = vmatpush1.msra.mxu0 0.0
  %1338 = vmatprep.subr.mxu0 0.0
  %1339 = vmatpush1.msra.mxu0 0.0
  %1340 = vmatprep.subr.mxu0 0.0
  %1341 = vmatpush1.msra.mxu0 0.0
  %1342 = vmatprep.subr.mxu0 0.0
  %1343 = vmatpush1.msra.mxu0 0.0
  %1344 = vmatprep.subr.mxu0 0.0
  %1345 = vmatpush1.msra.mxu0 0.0
  %1346 = vmatprep.subr.mxu0 0.0
  %1347 = vmatpush1.msra.mxu0 0.0
  %1348 = vmatprep.subr.mxu0 0.0
  %1349 = vmatpush1.msra.mxu0 0.0
  %1350 = vmatprep.mubr.f32.mxu0 0.0
  %1351 = vmatmul.mubr.f32.gmra.mrb[0].mxu0 %v30
  %v1352 = vpop.f32.mrb[0].mxu0
  %v1353 = vadd.f32 0.0, %v1352
  %v1354 = vpop.f32.mrb[0].mxu0
  %1355 = vmatprep.mubr.f32.mxu0 0.0
  %1356 = vmatmul.mubr.f32.gmra.mrb[0].mxu0 %v33
  %v1357 = vpop.f32.mrb[0].mxu0
  %v1358 = vadd.f32 0.0, %v1357
  %v1359 = vpop.f32.mrb[0].mxu0
  %1360 = vmatprep.mubr.f32.mxu0 0.0
  %1361 = vmatmul.mubr.f32.gmra.mrb[0].mxu0 %v36
  %v1362 = vpop.f32.mrb[0].mxu0
  %v1363 = vadd.f32 0.0, %v1362
  %v1364 = vpop.f32.mrb[0].mxu0
  %1365 = vmatprep.mubr.f32.mxu0 0.0
  %1366 = vmatmul.mubr.f32.gmra.mrb[0].mxu0 %v39
  %v1367 = vpop.f32.mrb[0].mxu0
  %v1368 = vadd.f32 0.0, %v1367
  %v1369 = vpop.f32.mrb[0].mxu0
  %1370 = vmatprep.mubr.f32.mxu0 0.0
  %1371 = vmatmul.mubr.f32.gmra.mrb[0].mxu0 %v42
  %v1372 = vpop.f32.mrb[0].mxu0
  %v1373 = vadd.f32 0.0, %v1372
  %v1374 = vpop.f32.mrb[0].mxu0
  %1375 = vmatprep.mubr.f32.mxu0 0.0
  %1376 = vmatmul.mubr.f32.gmra.mrb[0].mxu0 %v45
  %v1377 = vpop.f32.mrb[0].mxu0
  %v1378 = vadd.f32 0.0, %v1377
  %v1379 = vpop.f32.mrb[0].mxu0
  %1380 = vmatprep.mubr.f32.mxu0 0.0
  %1381 = vmatmul.mubr.f32.gmra.mrb[0].mxu0 %v48
  %v1382 = vpop.f32.mrb[0].mxu0
  %v1383 = vadd.f32 0.0, %v1382
  %v1384 = vpop.f32.mrb[0].mxu0
  %1385 = vmatprep.mubr.f32.mxu0 0.0
  %1386 = vmatmul.mubr.f32.gmra.mrb[0].mxu0 %v51
  %v1387 = vpop.f32.mrb[0].mxu0
  %v1388 = vadd.f32 0.0, %v1387
  %v1389 = vpop.f32.mrb[0].mxu0
  %1390 = vmatprep.mubr.f32.mxu0 0.0
  %1391 = vmatmul.mubr.f32.gmra.mrb[0].mxu0 %v54
  %v1392 = vpop.f32.mrb[0].mxu0
  %v1393 = vadd.f32 0.0, %v1392
  %v1394 = vpop.f32.mrb[0].mxu0
  %1395 = vmatprep.mubr.f32.mxu0 0.0
  %1396 = vmatmul.mubr.f32.gmra.mrb[0].mxu0 %v57
  %v1397 = vpop.f32.mrb[0].mxu0
  %v1398 = vadd.f32 0.0, %v1397
  %v1399 = vpop.f32.mrb[0].mxu0
  %1400 = vmatprep.mubr.f32.mxu0 0.0
  %1401 = vmatmul.mubr.f32.gmra.mrb[0].mxu0 %v60
  %v1402 = vpop.f32.mrb[0].mxu0
  %v1403 = vadd.f32 0.0, %v1402
  %v1404 = vpop.f32.mrb[0].mxu0
  %1405 = vmatprep.mubr.f32.mxu0 0.0
  %1406 = vmatmul.mubr.f32.gmra.mrb[0].mxu0 %v63
  %v1407 = vpop.f32.mrb[0].mxu0
  %v1408 = vadd.f32 0.0, %v1407
  %v1409 = vpop.f32.mrb[0].mxu0
  %1410 = vmatprep.mubr.f32.mxu0 0.0
  %1411 = vmatmul.mubr.f32.gmra.mrb[0].mxu0 %v66
  %v1412 = vpop.f32.mrb[0].mxu0
  %v1413 = vadd.f32 0.0, %v1412
  %v1414 = vpop.f32.mrb[0].mxu0
  %1415 = vmatprep.mubr.f32.mxu0 0.0
  %1416 = vmatmul.mubr.f32.gmra.mrb[0].mxu0 %v69
  %v1417 = vpop.f32.mrb[0].mxu0
  %v1418 = vadd.f32 0.0, %v1417
  %v1419 = vpop.f32.mrb[0].mxu0
  %1420 = vdwg.mxu0
  %v1421 = vmax.f32 %v1272, %v1353
  %v1422 = vmax.f32 %v1273, %v1358
  %v1423 = vmax.f32 %v1274, %v1363
  %v1424 = vmax.f32 %v1275, %v1368
  %v1425 = vmax.f32 %v1276, %v1373
  %v1426 = vmax.f32 %v1277, %v1378
  %v1427 = vmax.f32 %v1278, %v1383
  %v1428 = vmax.f32 %v1279, %v1388
  %v1429 = vmax.f32 %v1280, %v1393
  %v1430 = vmax.f32 %v1281, %v1398
  %v1431 = vmax.f32 %v1282, %v1403
  %v1432 = vmax.f32 %v1283, %v1408
  %v1433 = vmax.f32 %v1284, %v1413
  %v1434 = vmax.f32 %v1285, %v1418
  %v1436 = vrot.slane %v13, 1
  %v1437 = vsel %vm208, %v210, %v1436
  %1439 = vmatprep.subr.mxu0 0.0
  %1440 = vmatpush1.msra.mxu0 %v1437
  %1441 = vmatprep.subr.mxu0 0.0
  %1442 = vmatpush1.msra.mxu0 0.0
  %1443 = vmatprep.subr.mxu0 0.0
  %1444 = vmatpush1.msra.mxu0 0.0
  %1445 = vmatprep.subr.mxu0 0.0
  %1446 = vmatpush1.msra.mxu0 0.0
  %1447 = vmatprep.subr.mxu0 0.0
  %1448 = vmatpush1.msra.mxu0 0.0
  %1449 = vmatprep.subr.mxu0 0.0
  %1450 = vmatpush1.msra.mxu0 0.0
  %1451 = vmatprep.subr.mxu0 0.0
  %1452 = vmatpush1.msra.mxu0 0.0
  %1453 = vmatprep.subr.mxu0 0.0
  %1454 = vmatpush1.msra.mxu0 0.0
  %1455 = vmatprep.subr.mxu0 0.0
  %1456 = vmatpush1.msra.mxu0 0.0
  %1457 = vmatprep.subr.mxu0 0.0
  %1458 = vmatpush1.msra.mxu0 0.0
  %1459 = vmatprep.subr.mxu0 0.0
  %1460 = vmatpush1.msra.mxu0 0.0
  %1461 = vmatprep.subr.mxu0 0.0
  %1462 = vmatpush1.msra.mxu0 0.0
  %1463 = vmatprep.subr.mxu0 0.0
  %1464 = vmatpush1.msra.mxu0 0.0
  %1465 = vmatprep.subr.mxu0 0.0
  %1466 = vmatpush1.msra.mxu0 0.0
  %1467 = vmatprep.subr.mxu0 0.0
  %1468 = vmatpush1.msra.mxu0 0.0
  %1469 = vmatprep.subr.mxu0 0.0
  %1470 = vmatpush1.msra.mxu0 0.0
  %1471 = vmatprep.subr.mxu0 0.0
  %1472 = vmatpush1.msra.mxu0 0.0
  %1473 = vmatprep.subr.mxu0 0.0
  %1474 = vmatpush1.msra.mxu0 0.0
  %1475 = vmatprep.subr.mxu0 0.0
  %1476 = vmatpush1.msra.mxu0 0.0
  %1477 = vmatprep.subr.mxu0 0.0
  %1478 = vmatpush1.msra.mxu0 0.0
  %1479 = vmatprep.subr.mxu0 0.0
  %1480 = vmatpush1.msra.mxu0 0.0
  %1481 = vmatprep.subr.mxu0 0.0
  %1482 = vmatpush1.msra.mxu0 0.0
  %1483 = vmatprep.subr.mxu0 0.0
  %1484 = vmatpush1.msra.mxu0 0.0
  %1485 = vmatprep.subr.mxu0 0.0
  %1486 = vmatpush1.msra.mxu0 0.0
  %1487 = vmatprep.subr.mxu0 0.0
  %1488 = vmatpush1.msra.mxu0 0.0
  %1489 = vmatprep.subr.mxu0 0.0
  %1490 = vmatpush1.msra.mxu0 0.0
  %1491 = vmatprep.subr.mxu0 0.0
  %1492 = vmatpush1.msra.mxu0 0.0
  %1493 = vmatprep.subr.mxu0 0.0
  %1494 = vmatpush1.msra.mxu0 0.0
  %1495 = vmatprep.subr.mxu0 0.0
  %1496 = vmatpush1.msra.mxu0 0.0
  %1497 = vmatprep.subr.mxu0 0.0
  %1498 = vmatpush1.msra.mxu0 0.0
  %1499 = vmatprep.subr.mxu0 0.0
  %1500 = vmatpush1.msra.mxu0 0.0
  %1501 = vmatprep.subr.mxu0 0.0
  %1502 = vmatpush1.msra.mxu0 0.0
  %1503 = vmatprep.mubr.f32.mxu0 0.0
  %1504 = vmatmul.mubr.f32.gmra.mrb[0].mxu0 %v30
  %v1505 = vpop.f32.mrb[0].mxu0
  %v1506 = vadd.f32 0.0, %v1505
  %v1507 = vpop.f32.mrb[0].mxu0
  %1508 = vmatprep.mubr.f32.mxu0 0.0
  %1509 = vmatmul.mubr.f32.gmra.mrb[0].mxu0 %v33
  %v1510 = vpop.f32.mrb[0].mxu0
  %v1511 = vadd.f32 0.0, %v1510
  %v1512 = vpop.f32.mrb[0].mxu0
  %1513 = vmatprep.mubr.f32.mxu0 0.0
  %1514 = vmatmul.mubr.f32.gmra.mrb[0].mxu0 %v36
  %v1515 = vpop.f32.mrb[0].mxu0
  %v1516 = vadd.f32 0.0, %v1515
  %v1517 = vpop.f32.mrb[0].mxu0
  %1518 = vmatprep.mubr.f32.mxu0 0.0
  %1519 = vmatmul.mubr.f32.gmra.mrb[0].mxu0 %v39
  %v1520 = vpop.f32.mrb[0].mxu0
  %v1521 = vadd.f32 0.0, %v1520
  %v1522 = vpop.f32.mrb[0].mxu0
  %1523 = vmatprep.mubr.f32.mxu0 0.0
  %1524 = vmatmul.mubr.f32.gmra.mrb[0].mxu0 %v42
  %v1525 = vpop.f32.mrb[0].mxu0
  %v1526 = vadd.f32 0.0, %v1525
  %v1527 = vpop.f32.mrb[0].mxu0
  %1528 = vmatprep.mubr.f32.mxu0 0.0
  %1529 = vmatmul.mubr.f32.gmra.mrb[0].mxu0 %v45
  %v1530 = vpop.f32.mrb[0].mxu0
  %v1531 = vadd.f32 0.0, %v1530
  %v1532 = vpop.f32.mrb[0].mxu0
  %1533 = vmatprep.mubr.f32.mxu0 0.0
  %1534 = vmatmul.mubr.f32.gmra.mrb[0].mxu0 %v48
  %v1535 = vpop.f32.mrb[0].mxu0
  %v1536 = vadd.f32 0.0, %v1535
  %v1537 = vpop.f32.mrb[0].mxu0
  %1538 = vmatprep.mubr.f32.mxu0 0.0
  %1539 = vmatmul.mubr.f32.gmra.mrb[0].mxu0 %v51
  %v1540 = vpop.f32.mrb[0].mxu0
  %v1541 = vadd.f32 0.0, %v1540
  %v1542 = vpop.f32.mrb[0].mxu0
  %1543 = vmatprep.mubr.f32.mxu0 0.0
  %1544 = vmatmul.mubr.f32.gmra.mrb[0].mxu0 %v54
  %v1545 = vpop.f32.mrb[0].mxu0
  %v1546 = vadd.f32 0.0, %v1545
  %v1547 = vpop.f32.mrb[0].mxu0
  %1548 = vmatprep.mubr.f32.mxu0 0.0
  %1549 = vmatmul.mubr.f32.gmra.mrb[0].mxu0 %v57
  %v1550 = vpop.f32.mrb[0].mxu0
  %v1551 = vadd.f32 0.0, %v1550
  %v1552 = vpop.f32.mrb[0].mxu0
  %1553 = vmatprep.mubr.f32.mxu0 0.0
  %1554 = vmatmul.mubr.f32.gmra.mrb[0].mxu0 %v60
  %v1555 = vpop.f32.mrb[0].mxu0
  %v1556 = vadd.f32 0.0, %v1555
  %v1557 = vpop.f32.mrb[0].mxu0
  %1558 = vmatprep.mubr.f32.mxu0 0.0
  %1559 = vmatmul.mubr.f32.gmra.mrb[0].mxu0 %v63
  %v1560 = vpop.f32.mrb[0].mxu0
  %v1561 = vadd.f32 0.0, %v1560
  %v1562 = vpop.f32.mrb[0].mxu0
  %1563 = vmatprep.mubr.f32.mxu0 0.0
  %1564 = vmatmul.mubr.f32.gmra.mrb[0].mxu0 %v66
  %v1565 = vpop.f32.mrb[0].mxu0
  %v1566 = vadd.f32 0.0, %v1565
  %v1567 = vpop.f32.mrb[0].mxu0
  %1568 = vmatprep.mubr.f32.mxu0 0.0
  %1569 = vmatmul.mubr.f32.gmra.mrb[0].mxu0 %v69
  %v1570 = vpop.f32.mrb[0].mxu0
  %v1571 = vadd.f32 0.0, %v1570
  %v1572 = vpop.f32.mrb[0].mxu0
  %1573 = vdwg.mxu0
  %v1574 = vmax.f32 %v1421, %v1506
  %v1575 = vmax.f32 %v1422, %v1511
  %v1576 = vmax.f32 %v1423, %v1516
  %v1577 = vmax.f32 %v1424, %v1521
  %v1578 = vmax.f32 %v1425, %v1526
  %v1579 = vmax.f32 %v1426, %v1531
  %v1580 = vmax.f32 %v1427, %v1536
  %v1581 = vmax.f32 %v1428, %v1541
  %v1582 = vmax.f32 %v1429, %v1546
  %v1583 = vmax.f32 %v1430, %v1551
  %v1584 = vmax.f32 %v1431, %v1556
  %v1585 = vmax.f32 %v1432, %v1561
  %v1586 = vmax.f32 %v1433, %v1566
  %v1587 = vmax.f32 %v1434, %v1571
  %1588 = vset.pattern.permute.xlu0 8
  %1589 = vperm.xlu0 %1588, %v14
  %v1590 = vpop.permute.xlu0 %1589
  %1592 = vset.pattern.permute.xlu0 8
  %1593 = vperm.xlu0 %1592, %v15
  %v1594 = vpop.permute.xlu0 %1593
  %1596 = vset.pattern.permute.xlu0 8
  %1597 = vperm.xlu0 %1596, %v16
  %v1598 = vpop.permute.xlu0 %1597
  %1600 = vset.pattern.permute.xlu0 8
  %1601 = vperm.xlu0 %1600, %v17
  %v1602 = vpop.permute.xlu0 %1601
  %1604 = vset.pattern.permute.xlu0 8
  %1605 = vperm.xlu0 %1604, %v18
  %v1606 = vpop.permute.xlu0 %1605
  %1608 = vset.pattern.permute.xlu0 8
  %1609 = vperm.xlu0 %1608, %v19
  %v1610 = vpop.permute.xlu0 %1609
  %1612 = vset.pattern.permute.xlu0 8
  %1613 = vperm.xlu0 %1612, %v20
  %v1614 = vpop.permute.xlu0 %1613
  %1616 = vset.pattern.permute.xlu0 8
  %1617 = vperm.xlu0 %1616, %v21
  %v1618 = vpop.permute.xlu0 %1617
  %1620 = vset.pattern.permute.xlu0 8
  %1621 = vperm.xlu0 %1620, %v22
  %v1622 = vpop.permute.xlu0 %1621
  %1624 = vset.pattern.permute.xlu0 8
  %1625 = vperm.xlu0 %1624, %v23
  %v1626 = vpop.permute.xlu0 %1625
  %1628 = vset.pattern.permute.xlu0 8
  %1629 = vperm.xlu0 %1628, %v24
  %v1630 = vpop.permute.xlu0 %1629
  %1632 = vset.pattern.permute.xlu0 8
  %1633 = vperm.xlu0 %1632, %v25
  %v1634 = vpop.permute.xlu0 %1633
  %1636 = vset.pattern.permute.xlu0 8
  %1637 = vperm.xlu0 %1636, %v26
  %v1638 = vpop.permute.xlu0 %1637
  %1640 = vset.pattern.permute.xlu0 8
  %1641 = vperm.xlu0 %1640, %v27
  %v1642 = vpop.permute.xlu0 %1641
  %v1644 = vadd.f32 %v1574, %v1590
  %v1645 = vadd.f32 %v1575, %v1594
  %v1646 = vadd.f32 %v1576, %v1598
  %v1647 = vadd.f32 %v1577, %v1602
  %v1648 = vadd.f32 %v1578, %v1606
  %v1649 = vadd.f32 %v1579, %v1610
  %v1650 = vadd.f32 %v1580, %v1614
  %v1651 = vadd.f32 %v1581, %v1618
  %v1652 = vadd.f32 %v1582, %v1622
  %v1653 = vadd.f32 %v1583, %v1626
  %v1654 = vadd.f32 %v1584, %v1630
  %v1655 = vadd.f32 %v1585, %v1634
  %v1656 = vadd.f32 %v1586, %v1638
  %v1657 = vadd.f32 %v1587, %v1642
  %v1658 = vmax.f32 %v1644, 0.0
  %v1659 = vmax.f32 %v1645, 0.0
  %v1660 = vmax.f32 %v1646, 0.0
  %v1661 = vmax.f32 %v1647, 0.0
  %v1662 = vmax.f32 %v1648, 0.0
  %v1663 = vmax.f32 %v1649, 0.0
  %v1664 = vmax.f32 %v1650, 0.0
  %v1665 = vmax.f32 %v1651, 0.0
  %v1666 = vmax.f32 %v1652, 0.0
  %v1667 = vmax.f32 %v1653, 0.0
  %v1668 = vmax.f32 %v1654, 0.0
  %v1669 = vmax.f32 %v1655, 0.0
  %v1670 = vmax.f32 %v1656, 0.0
  %v1671 = vmax.f32 %v1657, 0.0
  %v1672 = vld [vmem:[%s1] sm:$0xff]
  %v1673 = vld [vmem:[%s1 + $0x8] sm:$0xff]
  %v1674 = vld [vmem:[%s1 + $0x10] sm:$0xff]
  %v1675 = vld [vmem:[%s1 + $0x18] sm:$0xff]
  %v1676 = vld [vmem:[%s1 + $0x20] sm:$0xff]
  %v1677 = vld [vmem:[%s1 + $0x28] sm:$0xff]
  %v1678 = vld [vmem:[%s1 + $0x30] sm:$0xff]
  %v1679 = vld [vmem:[%s1 + $0x38] sm:$0xff]
  %v1680 = vld [vmem:[%s1 + $0x40] sm:$0xff]
  %v1681 = vld [vmem:[%s1 + $0x48] sm:$0xff]
  %v1682 = vld [vmem:[%s1 + $0x50] sm:$0xff]
  %v1683 = vld [vmem:[%s1 + $0x58] sm:$0xff]
  %v1684 = vld [vmem:[%s1 + $0x60] sm:$0xff]
  %v1685 = vld [vmem:[%s1 + $0x68] sm:$0xff]
  %v1686 = vld [vmem:[%s1 + $0x70] sm:$0xff]
  %v1687 = vld [vmem:[%s1 + $0x78] sm:$0xff]
  %v1688 = vld [vmem:[%s1 + $0xf0] sm:$0x1]
  %v1689 = vlaneseq
  %v1690 = vshrl.u32 %v1689, 7
  %v1691 = vsub.s32 0, %v1690
  %v1692 = vrot.slane %v1688, %v1691
  %1693 = vmatprep.subr.mxu0 0.0
  %1694 = vmatpush1.msra.mxu0 %v1672
  %1695 = vmatprep.subr.mxu0 0.0
  %1696 = vmatpush1.msra.mxu0 %v1673
  %1697 = vmatprep.subr.mxu0 0.0
  %1698 = vmatpush1.msra.mxu0 %v1674
  %1699 = vmatprep.subr.mxu0 0.0
  %1700 = vmatpush1.msra.mxu0 %v1675
  %1701 = vmatprep.subr.mxu0 0.0
  %1702 = vmatpush1.msra.mxu0 %v1676
  %1703 = vmatprep.subr.mxu0 0.0
  %1704 = vmatpush1.msra.mxu0 %v1677
  %1705 = vmatprep.subr.mxu0 0.0
  %1706 = vmatpush1.msra.mxu0 %v1678
  %1707 = vmatprep.subr.mxu0 0.0
  %1708 = vmatpush1.msra.mxu0 %v1679
  %1709 = vmatprep.subr.mxu0 0.0
  %1710 = vmatpush1.msra.mxu0 %v1680
  %1711 = vmatprep.subr.mxu0 0.0
  %1712 = vmatpush1.msra.mxu0 %v1681
  %1713 = vmatprep.subr.mxu0 0.0
  %1714 = vmatpush1.msra.mxu0 %v1682
  %1715 = vmatprep.subr.mxu0 0.0
  %1716 = vmatpush1.msra.mxu0 %v1683
  %1717 = vmatprep.subr.mxu0 0.0
  %1718 = vmatpush1.msra.mxu0 %v1684
  %1719 = vmatprep.subr.mxu0 0.0
  %1720 = vmatpush1.msra.mxu0 %v1685
  %1721 = vmatprep.subr.mxu0 0.0
  %1722 = vmatpush1.msra.mxu0 %v1686
  %1723 = vmatprep.subr.mxu0 0.0
  %1724 = vmatpush1.msra.mxu0 %v1687
  %1725 = vmatprep.subr.mxu0 0.0
  %1726 = vmatpush1.msra.mxu0 0.0
  %1727 = vmatprep.subr.mxu0 0.0
  %1728 = vmatpush1.msra.mxu0 0.0
  %1729 = vmatprep.subr.mxu0 0.0
  %1730 = vmatpush1.msra.mxu0 0.0
  %1731 = vmatprep.subr.mxu0 0.0
  %1732 = vmatpush1.msra.mxu0 0.0
  %1733 = vmatprep.subr.mxu0 0.0
  %1734 = vmatpush1.msra.mxu0 0.0
  %1735 = vmatprep.subr.mxu0 0.0
  %1736 = vmatpush1.msra.mxu0 0.0
  %1737 = vmatprep.subr.mxu0 0.0
  %1738 = vmatpush1.msra.mxu0 0.0
  %1739 = vmatprep.subr.mxu0 0.0
  %1740 = vmatpush1.msra.mxu0 0.0
  %1741 = vmatprep.subr.mxu0 0.0
  %1742 = vmatpush1.msra.mxu0 0.0
  %1743 = vmatprep.subr.mxu0 0.0
  %1744 = vmatpush1.msra.mxu0 0.0
  %1745 = vmatprep.subr.mxu0 0.0
  %1746 = vmatpush1.msra.mxu0 0.0
  %1747 = vmatprep.subr.mxu0 0.0
  %1748 = vmatpush1.msra.mxu0 0.0
  %1749 = vmatprep.subr.mxu0 0.0
  %1750 = vmatpush1.msra.mxu0 0.0
  %1751 = vmatprep.subr.mxu0 0.0
  %1752 = vmatpush1.msra.mxu0 0.0
  %1753 = vmatprep.subr.mxu0 0.0
  %1754 = vmatpush1.msra.mxu0 0.0
  %1755 = vmatprep.subr.mxu0 0.0
  %1756 = vmatpush1.msra.mxu0 0.0
  %1757 = vmatprep.mubr.f32.mxu0 0.0
  %1758 = vmatmul.mubr.f32.gmra.mrb[0].mxu0 %v1658
  %v1759 = vpop.f32.mrb[0].mxu0
  %v1760 = vadd.f32 %v1692, %v1759
  %v1761 = vpop.f32.mrb[0].mxu0
  %1762 = vmatprep.mubr.f32.mxu0 0.0
  %1763 = vmatmul.mubr.f32.gmra.mrb[0].mxu0 %v1659
  %v1764 = vpop.f32.mrb[0].mxu0
  %v1765 = vadd.f32 %v1692, %v1764
  %v1766 = vpop.f32.mrb[0].mxu0
  %1767 = vmatprep.mubr.f32.mxu0 0.0
  %1768 = vmatmul.mubr.f32.gmra.mrb[0].mxu0 %v1660
  %v1769 = vpop.f32.mrb[0].mxu0
  %v1770 = vadd.f32 %v1692, %v1769
  %v1771 = vpop.f32.mrb[0].mxu0
  %1772 = vmatprep.mubr.f32.mxu0 0.0
  %1773 = vmatmul.mubr.f32.gmra.mrb[0].mxu0 %v1661
  %v1774 = vpop.f32.mrb[0].mxu0
  %v1775 = vadd.f32 %v1692, %v1774
  %v1776 = vpop.f32.mrb[0].mxu0
  %1777 = vmatprep.mubr.f32.mxu0 0.0
  %1778 = vmatmul.mubr.f32.gmra.mrb[0].mxu0 %v1662
  %v1779 = vpop.f32.mrb[0].mxu0
  %v1780 = vadd.f32 %v1692, %v1779
  %v1781 = vpop.f32.mrb[0].mxu0
  %1782 = vmatprep.mubr.f32.mxu0 0.0
  %1783 = vmatmul.mubr.f32.gmra.mrb[0].mxu0 %v1663
  %v1784 = vpop.f32.mrb[0].mxu0
  %v1785 = vadd.f32 %v1692, %v1784
  %v1786 = vpop.f32.mrb[0].mxu0
  %1787 = vmatprep.mubr.f32.mxu0 0.0
  %1788 = vmatmul.mubr.f32.gmra.mrb[0].mxu0 %v1664
  %v1789 = vpop.f32.mrb[0].mxu0
  %v1790 = vadd.f32 %v1692, %v1789
  %v1791 = vpop.f32.mrb[0].mxu0
  %1792 = vmatprep.mubr.f32.mxu0 0.0
  %1793 = vmatmul.mubr.f32.gmra.mrb[0].mxu0 %v1665
  %v1794 = vpop.f32.mrb[0].mxu0
  %v1795 = vadd.f32 %v1692, %v1794
  %v1796 = vpop.f32.mrb[0].mxu0
  %1797 = vmatprep.mubr.f32.mxu0 0.0
  %1798 = vmatmul.mubr.f32.gmra.mrb[0].mxu0 %v1666
  %v1799 = vpop.f32.mrb[0].mxu0
  %v1800 = vadd.f32 %v1692, %v1799
  %v1801 = vpop.f32.mrb[0].mxu0
  %1802 = vmatprep.mubr.f32.mxu0 0.0
  %1803 = vmatmul.mubr.f32.gmra.mrb[0].mxu0 %v1667
  %v1804 = vpop.f32.mrb[0].mxu0
  %v1805 = vadd.f32 %v1692, %v1804
  %v1806 = vpop.f32.mrb[0].mxu0
  %1807 = vmatprep.mubr.f32.mxu0 0.0
  %1808 = vmatmul.mubr.f32.gmra.mrb[0].mxu0 %v1668
  %v1809 = vpop.f32.mrb[0].mxu0
  %v1810 = vadd.f32 %v1692, %v1809
  %v1811 = vpop.f32.mrb[0].mxu0
  %1812 = vmatprep.mubr.f32.mxu0 0.0
  %1813 = vmatmul.mubr.f32.gmra.mrb[0].mxu0 %v1669
  %v1814 = vpop.f32.mrb[0].mxu0
  %v1815 = vadd.f32 %v1692, %v1814
  %v1816 = vpop.f32.mrb[0].mxu0
  %1817 = vmatprep.mubr.f32.mxu0 0.0
  %1818 = vmatmul.mubr.f32.gmra.mrb[0].mxu0 %v1670
  %v1819 = vpop.f32.mrb[0].mxu0
  %v1820 = vadd.f32 %v1692, %v1819
  %v1821 = vpop.f32.mrb[0].mxu0
  %1822 = vmatprep.mubr.f32.mxu0 0.0
  %1823 = vmatmul.mubr.f32.gmra.mrb[0].mxu0 %v1671
  %v1824 = vpop.f32.mrb[0].mxu0
  %v1825 = vadd.f32 %v1692, %v1824
  %v1826 = vpop.f32.mrb[0].mxu0
  %1827 = vdwg.mxu0
  %v1828 = vmax.f32 %v1760, 0.0
  %v1829 = vmax.f32 %v1765, 0.0
  %v1830 = vmax.f32 %v1770, 0.0
  %v1831 = vmax.f32 %v1775, 0.0
  %v1832 = vmax.f32 %v1780, 0.0
  %v1833 = vmax.f32 %v1785, 0.0
  %v1834 = vmax.f32 %v1790, 0.0
  %v1835 = vmax.f32 %v1795, 0.0
  %v1836 = vmax.f32 %v1800, 0.0
  %v1837 = vmax.f32 %v1805, 0.0
  %v1838 = vmax.f32 %v1810, 0.0
  %v1839 = vmax.f32 %v1815, 0.0
  %v1840 = vmax.f32 %v1820, 0.0
  %v1841 = vmax.f32 %v1825, 0.0
  %v1842 = vld [vmem:[%s1 + $0xf1] sm:$0x1]
  %v1843 = vld [vmem:[%s1 + $0xf2] sm:$0x1]
  %1845 = vset.pattern.permute.xlu0 0
  %1846 = vperm.xlu0 %1845, %v1843
  %v1847 = vpop.permute.xlu0 %1846
  %vm1849 = vcmask 523264
  %v1851 = vsel %vm1849, %v1842, 0
  %v1854 = vsel %vm1849, %v1828, 0
  %v1857 = vsel %vm1849, %v1829, 0
  %v1860 = vsel %vm1849, %v1830, 0
  %v1863 = vsel %vm1849, %v1831, 0
  %v1866 = vsel %vm1849, %v1832, 0
  %v1869 = vsel %vm1849, %v1833, 0
  %v1872 = vsel %vm1849, %v1834, 0
  %v1875 = vsel %vm1849, %v1835, 0
  %v1878 = vsel %vm1849, %v1836, 0
  %v1881 = vsel %vm1849, %v1837, 0
  %v1884 = vsel %vm1849, %v1838, 0
  %v1887 = vsel %vm1849, %v1839, 0
  %v1890 = vsel %vm1849, %v1840, 0
  %v1893 = vsel %vm1849, %v1841, 0
  %1895 = vmatprep.subr.mxu0 0.0
  %1896 = vmatpush1.xpose.msra.mxu0 %v1854
  %1897 = vmatprep.subr.mxu0 0.0
  %1898 = vmatpush1.xpose.msra.mxu0 %v1857
  %1899 = vmatprep.subr.mxu0 0.0
  %1900 = vmatpush1.xpose.msra.mxu0 %v1860
  %1901 = vmatprep.subr.mxu0 0.0
  %1902 = vmatpush1.xpose.msra.mxu0 %v1863
  %1903 = vmatprep.subr.mxu0 0.0
  %1904 = vmatpush1.xpose.msra.mxu0 %v1866
  %1905 = vmatprep.subr.mxu0 0.0
  %1906 = vmatpush1.xpose.msra.mxu0 %v1869
  %1907 = vmatprep.subr.mxu0 0.0
  %1908 = vmatpush1.xpose.msra.mxu0 %v1872
  %1909 = vmatprep.subr.mxu0 0.0
  %1910 = vmatpush1.xpose.msra.mxu0 %v1875
  %1911 = vmatprep.subr.mxu0 0.0
  %1912 = vmatpush1.xpose.msra.mxu0 %v1878
  %1913 = vmatprep.subr.mxu0 0.0
  %1914 = vmatpush1.xpose.msra.mxu0 %v1881
  %1915 = vmatprep.subr.mxu0 0.0
  %1916 = vmatpush1.xpose.msra.mxu0 %v1884
  %1917 = vmatprep.subr.mxu0 0.0
  %1918 = vmatpush1.xpose.msra.mxu0 %v1887
  %1919 = vmatprep.subr.mxu0 0.0
  %1920 = vmatpush1.xpose.msra.mxu0 %v1890
  %1921 = vmatprep.subr.mxu0 0.0
  %1922 = vmatpush1.xpose.msra.mxu0 %v1893
  %1923 = vmatprep.subr.mxu0 0.0
  %1924 = vmatpush1.xpose.msra.mxu0 0.0
  %1925 = vmatprep.subr.mxu0 0.0
  %1926 = vmatpush1.xpose.msra.mxu0 0.0
  %1927 = vmatprep.subr.mxu0 0.0
  %1928 = vmatpush1.xpose.msra.mxu0 0.0
  %1929 = vmatprep.subr.mxu0 0.0
  %1930 = vmatpush1.xpose.msra.mxu0 0.0
  %1931 = vmatprep.subr.mxu0 0.0
  %1932 = vmatpush1.xpose.msra.mxu0 0.0
  %1933 = vmatprep.subr.mxu0 0.0
  %1934 = vmatpush1.xpose.msra.mxu0 0.0
  %1935 = vmatprep.subr.mxu0 0.0
  %1936 = vmatpush1.xpose.msra.mxu0 0.0
  %1937 = vmatprep.subr.mxu0 0.0
  %1938 = vmatpush1.xpose.msra.mxu0 0.0
  %1939 = vmatprep.subr.mxu0 0.0
  %1940 = vmatpush1.xpose.msra.mxu0 0.0
  %1941 = vmatprep.subr.mxu0 0.0
  %1942 = vmatpush1.xpose.msra.mxu0 0.0
  %1943 = vmatprep.subr.mxu0 0.0
  %1944 = vmatpush1.xpose.msra.mxu0 0.0
  %1945 = vmatprep.subr.mxu0 0.0
  %1946 = vmatpush1.xpose.msra.mxu0 0.0
  %1947 = vmatprep.subr.mxu0 0.0
  %1948 = vmatpush1.xpose.msra.mxu0 0.0
  %1949 = vmatprep.subr.mxu0 0.0
  %1950 = vmatpush1.xpose.msra.mxu0 0.0
  %1951 = vmatprep.subr.mxu0 0.0
  %1952 = vmatpush1.xpose.msra.mxu0 0.0
  %1953 = vmatprep.subr.mxu0 0.0
  %1954 = vmatpush1.xpose.msra.mxu0 0.0
  %1955 = vmatprep.subr.mxu0 0.0
  %1956 = vmatpush1.xpose.msra.mxu0 0.0
  %1957 = vmatprep.subr.mxu0 0.0
  %1958 = vmatpush1.xpose.msra.mxu0 0.0
  %1959 = vmatprep.mubr.f32.mxu0 0.0
  %1960 = vmatmul.mubr.f32.gmra.mrb[0].mxu0 %v1851
  %v1961 = vpop.f32.mrb[0].mxu0
  %v1962 = vadd.f32 %v1847, %v1961
  %v1963 = vpop.f32.mrb[0].mxu0
  %1964 = vdwg.mxu0
  %v1965 = vsub.f32 %v1962, %v1962
  %v1966 = vmul.f32 %v1965, 1.442695
  %v1967 = vpow.pop %v1966
  %vm1968 = vcmask 909312
  %1969 = vst.msk [vmem:[%s2] sm:$0x1] %vm1968, %v1967
  // Predicated region
  $region10: #{cnn_forward.1} parent=0 // pred_check
    _
  $region11: #{cnn_forward.1} parent=0 // pred_check_branch
    %1971 = sbr.rel (0) target = $region13
  $region12: #{cnn_forward.1} parent=0 // pred_region
    _
  $region13: #{cnn_forward.1} parent=0 // pred_fallthru
    _
  // Predicated region
  $region14: #{cnn_forward.1} parent=0 // pred_check
    _
  $region15: #{cnn_forward.1} parent=0 // pred_check_branch
    %1973 = sbr.rel (0) target = $region17
  $region16: #{cnn_forward.1} parent=0 // pred_region
    _
  $region17: #{cnn_forward.1} parent=0 // pred_fallthru
    _

</llo_original>
